<compile_context>
chip_gen: v6e
topology: v6e:2x2x1
jax: 0.10.0
libtpu: 0.0.40
codegen_flags: <defaults>
</compile_context>

<pallas_src>
import numpy as np
import jax
import jax.numpy as jnp
from jax.experimental import pallas as pl
from jax.experimental.pallas import tpu as pltpu

_LOG_2PI = float(np.log(2.0 * np.pi))
_SIGMA_P = 0.1          # transition (prior) std
_DECODER_STD = 1.0      # decoder observation std
_KL_BETA = 1.0          # self.kl_beta = 1 in the module
_REGULARIZATION = False # constructor flag `regularization`


def _ru(a, m):
    return ((a + m - 1) // m) * m


def _cdiv(a, b):
    return (a + b - 1) // b


def _small_layout(dim_x, dim_xhat, hidden):
    """Row offsets of every fused small weight inside one packed (R,128) slab."""
    pieces = [
        ("w_l1", 3 * dim_x, 2 * hidden),                       # [vel-L1 | pxhat-L1]
        ("b_l1", 1, 2 * hidden),
        ("w_heads", 2 * hidden, 3 * dim_x + 2 * dim_xhat),     # block-diag heads
        ("b_heads", 1, 3 * dim_x + 2 * dim_xhat),
        ("wd1", dim_xhat, hidden),                             # decoder L1
        ("bd1", 1, hidden),
        ("we2", hidden, 2 * dim_x),                            # encoder heads
        ("be2", 1, 2 * dim_x),
        ("be1", 1, hidden),                                    # encoder L1 bias
    ]
    offs, r, wmax = {}, 0, 0
    for name, rows, cols in pieces:
        offs[name] = (r, rows, cols)
        r += _ru(rows, 8)          # keep every piece sublane-aligned
        wmax = max(wmax, cols)
    return offs, _ru(r, 8), _ru(wmax, 128)


def _make_cell_kernel(dim_x, dim_xhat, hidden, d_true, dc, regularization):
    """Fused cell kernel; grid = (batch tiles [parallel], D_img chunks [arbitrary])."""
    offs, _, _ = _small_layout(dim_x, dim_xhat, hidden)
    mask_cols = (d_true % dc) != 0     # padded D columns exist in the last chunk

    def kernel(S_ref, I_ref, Wsm_ref, We1_ref, Wd2_ref, bd2_ref,
               out_ref, he_acc, ll_acc):
        BT = S_ref.shape[0]
        j = pl.program_id(1)
        nd = pl.num_programs(1)

        def piece(name):
            r0, rows, cols = offs[name]
            return Wsm_ref[r0:r0 + rows, 0:cols]

        def dot(a, b):
            return jnp.dot(a, b, preferred_element_type=jnp.float32)

        # ---- unpack the lane-packed per-row inputs (one DMA, static slices)
        S = S_ref[...]                              # (BT, 128) f32
        x1 = S[:, 0:dim_x]                          # x_q_{t-1}
        u = S[:, dim_x:2 * dim_x]                   # u_{t-1}
        x2 = S[:, 2 * dim_x:3 * dim_x]              # x_q_{t-2}
        o = 3 * dim_x
        dt = S[:, o:o + 1]                          # (BT, 1)
        eps_xh = S[:, o + 1:o + 1 + dim_xhat]
        eps_x = S[:, o + 1 + dim_xhat:o + 1 + dim_xhat + dim_x]

        # ---- v_{t-1} = (x_{t-1} - x_{t-2}) / dt
        # full-precision divide (matches PyTorch); dt is only (BT,1) so the
        # EUP approx path buys nothing here.
        inv_dt = pl.reciprocal(dt, approx=False)
        v_tn1 = (x1 - x2) * inv_dt

        # ---- fused layer-1: velocity([x,u,v]) and pxhat([x,u]) in ONE dot
        xuv = jnp.concatenate([S[:, 0:2 * dim_x], v_tn1], axis=1)    # (BT, 3*dim_x)
        h12 = jnp.maximum(dot(xuv, piece("w_l1")) + piece("b_l1"), 0.0)

        # ---- fused block-diagonal heads: [A | log(-B) | log(C) | xh_mu | xh_logstd]
        heads = dot(h12, piece("w_heads")) + piece("b_heads")
        A_diag = heads[:, 0:dim_x]
        B_diag = -jnp.exp(heads[:, dim_x:2 * dim_x])
        C_diag = jnp.exp(heads[:, 2 * dim_x:3 * dim_x])
        v_t = v_tn1 + dt * (A_diag * x1 + B_diag * v_tn1 + C_diag * u)

        xh_mu = heads[:, 3 * dim_x:3 * dim_x + dim_xhat]
        xh_std = jnp.exp(heads[:, 3 * dim_x + dim_xhat:3 * dim_x + 2 * dim_xhat])
        xhat_t = xh_mu + xh_std * eps_xh            # p_xhat.rsample()

        # ---- decoder hidden (needed for every D_img chunk; tiny recompute)
        hd = jnp.maximum(dot(xhat_t, piece("wd1")) + piece("bd1"), 0.0)

        @pl.when(j == 0)
        def _():
            he_acc[...] = jnp.zeros_like(he_acc)
            ll_acc[...] = jnp.zeros_like(ll_acc)

        # ---- D_img-chunked: encoder matmul accumulation, decoder mean, log-lik
        I_chunk = I_ref[...]                                        # (BT, dc) f32
        he_acc[...] += dot(I_chunk.astype(jnp.bfloat16), We1_ref[...])
        I_mu = dot(hd.astype(jnp.bfloat16), Wd2_ref[...]) + bd2_ref[...]
        inv_var = 1.0 / (_DECODER_STD * _DECODER_STD)
        ll = (-0.5 * (((I_chunk - I_mu) ** 2) * inv_var + _LOG_2PI)
              - float(np.log(_DECODER_STD)))
        if mask_cols:
            col = j * dc + jax.lax.broadcasted_iota(jnp.int32, (1, dc), 1)
            ll = jnp.where(col < d_true, ll, 0.0)
        ll_acc[...] += jnp.sum(ll, axis=1, keepdims=True)

        # ---- finalize on the last D_img chunk: encoder heads, KL, output slab
        @pl.when(j == nd - 1)
        def _():
            he = jnp.maximum(he_acc[...] + piece("be1"), 0.0)
            heads_e = dot(he, piece("we2")) + piece("be2")
            q_mu = heads_e[:, 0:dim_x]
            q_logstd = heads_e[:, dim_x:2 * dim_x]
            q_std = jnp.exp(q_logstd)

            # transition prior p(x_t | x_{t-1}, v_t; dt)
            p_mu = x1 + dt * v_t
            kl = (float(np.log(_SIGMA_P)) - q_logstd
                  + (q_std * q_std + (q_mu - p_mu) ** 2)
                  / (2.0 * _SIGMA_P * _SIGMA_P) - 0.5)
            kl_row = jnp.sum(kl, axis=1, keepdims=True)

            x_q_t = q_mu + q_std * eps_x            # q_encoder.rsample()

            # lane-dense output slab: [x_q_t | v_t | ll_row | kl_row | (kl01)]
            pieces_out = [x_q_t, v_t, ll_acc[...], kl_row]
            if regularization:
                kl01 = -q_logstd + 0.5 * (q_std * q_std + q_mu * q_mu) - 0.5
                pieces_out.append(jnp.sum(kl01, axis=1, keepdims=True))
            used = sum(p.shape[1] for p in pieces_out)
            pieces_out.append(jnp.zeros((BT, 128 - used), jnp.float32))
            out_ref[...] = jnp.concatenate(pieces_out, axis=1)

    return kernel


def init_params(key, dim_x, dim_xhat, dim_img, hidden):
    """Deterministic synthetic parameters, pre-fused and packed (no checkpoint)."""
    ks = iter(jax.random.split(key, 12))

    def w(fi, fo):
        return jax.random.normal(next(ks), (fi, fo), jnp.float32) / np.sqrt(fi)

    # individual stand-in MLP weights
    w_vel1 = w(3 * dim_x, hidden)          # input order [x, u, v]
    w_vel2 = w(hidden, 3 * dim_x)          # heads [A | log(-B) | log(C)]
    w_px1 = w(2 * dim_x, hidden)           # input [x, u]
    w_px2 = w(hidden, 2 * dim_xhat)        # heads [mu | logstd]
    we1 = w(dim_img, hidden)
    we2 = w(hidden, 2 * dim_x)             # heads [mu | logstd]
    wd1 = w(dim_xhat, hidden)
    wd2 = w(hidden, dim_img)

    b_l1 = jnp.zeros((1, 2 * hidden), jnp.float32)
    b_heads = jnp.concatenate(
        [jnp.zeros((1, 3 * dim_x)), jnp.zeros((1, dim_xhat)),
         jnp.full((1, dim_xhat), -1.0)], axis=1).astype(jnp.float32)
    be1 = jnp.zeros((1, hidden), jnp.float32)
    be2 = jnp.concatenate(
        [jnp.zeros((1, dim_x)), jnp.full((1, dim_x), -1.0)],
        axis=1).astype(jnp.float32)
    bd1 = jnp.zeros((1, hidden), jnp.float32)
    bd2 = jnp.zeros((1, dim_img), jnp.float32)

    # --- fuse small matmuls: one L1 dot + one block-diagonal heads dot
    w_l1 = jnp.zeros((3 * dim_x, 2 * hidden), jnp.float32)
    w_l1 = w_l1.at[:, :hidden].set(w_vel1)
    w_l1 = w_l1.at[:2 * dim_x, hidden:].set(w_px1)

    w_heads = jnp.zeros((2 * hidden, 3 * dim_x + 2 * dim_xhat), jnp.float32)
    w_heads = w_heads.at[:hidden, :3 * dim_x].set(w_vel2)
    w_heads = w_heads.at[hidden:, 3 * dim_x:].set(w_px2)

    # --- pack every small weight into one lane-dense slab
    offs, rows, width = _small_layout(dim_x, dim_xhat, hidden)
    w_small = jnp.zeros((rows, width), jnp.float32)
    for name, arr in [("w_l1", w_l1), ("b_l1", b_l1),
                      ("w_heads", w_heads), ("b_heads", b_heads),
                      ("wd1", wd1), ("bd1", bd1),
                      ("we2", we2), ("be2", be2), ("be1", be1)]:
        r0, nr, nc = offs[name]
        w_small = w_small.at[r0:r0 + nr, :nc].set(arr)

    return {
        "w_small": w_small,                 # (R, 128) f32 packed small weights
        "we1": we1.astype(jnp.bfloat16),    # (D_img, hidden) encoder L1
        "wd2": wd2.astype(jnp.bfloat16),    # (hidden, D_img) decoder L2
        "bd2": bd2,                         # (1, D_img)
    }


def newtonian_vae_v2_derivation_cell(params, I_t, x_q_tn1, x_q_tn2, u_tn1, dt,
                                     eps_xhat, eps_x):
    """Wrapper: packs inputs, pads batch / D_img, invokes the fused Pallas kernel."""
    B = I_t.shape[0]
    D_img = int(np.prod(I_t.shape[1:]))
    dim_x = x_q_tn1.shape[1]
    dim_xhat = eps_xhat.shape[1]
    hidden = params["we1"].shape[1]

    assert 3 * dim_x + 1 + dim_xhat + dim_x <= 128   # packed-input lanes fit
    assert 2 * dim_x + 3 <= 128                      # packed-output lanes fit

    # ---- batch tiling: >=2 tiles whenever B > 8 so both v7x TCs get work
    if B <= 8:
        BT = 8
    else:
        BT = min(128, _ru(_cdiv(B, 2), 8))
    num_bt = _cdiv(B, BT)
    B_pad = num_bt * BT

    # ---- D_img tiling ("arbitrary" reduction axis) keeps peak VMEM bounded
    DC = min(_ru(D_img, 128), 1024)
    D_pad = _ru(D_img, DC)
    num_d = D_pad // DC

    # ---- one lane-packed small-input slab: [x1 | u | x2 | dt | eps_xh | eps_x]
    dt = jnp.asarray(dt, jnp.float32).reshape(-1, 1)
    if dt.shape[0] != B:
        dt = jnp.broadcast_to(dt, (B, 1))
    core = jnp.concatenate(
        [x_q_tn1.astype(jnp.float32), u_tn1.astype(jnp.float32),
         x_q_tn2.astype(jnp.float32), dt,
         eps_xhat.astype(jnp.float32), eps_x.astype(jnp.float32)], axis=1)
    S = jnp.zeros((B_pad, 128), jnp.float32)
    S = S.at[:B, :core.shape[1]].set(core)
    S = S.at[B:, 3 * dim_x].set(1.0)         # keep 1/dt finite on padded rows

    # ---- image: flatten NCHW, pad batch rows and D_img columns
    # TODO(synk): shipping I as bf16 would halve the dominant HBM traffic;
    #             kept f32 to match the reference forward numerics.
    I_flat = I_t.reshape(B, D_img).astype(jnp.float32)
    I_pad = jnp.zeros((B_pad, D_pad), jnp.float32).at[:B, :D_img].set(I_flat)

    # ---- pad the D_img-sized weights to the chunked extent (zero pad columns)
    we1 = jnp.zeros((D_pad, hidden), jnp.bfloat16).at[:D_img, :].set(params["we1"])
    wd2 = jnp.zeros((hidden, D_pad), jnp.bfloat16).at[:, :D_img].set(params["wd2"])
    bd2 = jnp.zeros((1, D_pad), jnp.float32).at[:, :D_img].set(params["bd2"])
    w_small = params["w_small"]

    # ---- VMEM budget from the real per-tile footprint (double-buffered tiles
    #      + generous headroom for in-kernel intermediates); >=32MiB, <=64MiB.
    est = (2 * BT * 128 * 4            # packed small inputs
           + 2 * BT * DC * 4           # image chunk
           + 2 * w_small.size * 4      # packed small weights
           + 2 * DC * hidden * 2       # encoder W1 chunk (bf16)
           + 2 * hidden * DC * 2       # decoder W2 chunk (bf16)
           + 2 * 8 * DC * 4            # decoder b2 chunk
           + 2 * BT * 128 * 4          # output slab
           + BT * hidden * 4 + BT * 128 * 4   # scratch
           + 6 * BT * DC * 4)          # intermediates (bf16 copy, I_mu, ll, ...)
    vmem_limit = int(min(64 << 20, max(32 << 20, 2 * est)))

    kernel = _make_cell_kernel(dim_x, dim_xhat, hidden, D_img, DC,
                               _REGULARIZATION)

    out = pl.pallas_call(
        kernel,
        out_shape=jax.ShapeDtypeStruct((B_pad, 128), jnp.float32),
        grid=(num_bt, num_d),
        in_specs=[
            pl.BlockSpec((BT, 128), lambda i, j: (i, 0)),        # packed inputs
            pl.BlockSpec((BT, DC), lambda i, j: (i, j)),         # image chunk
            pl.BlockSpec(w_small.shape, lambda i, j: (0, 0)),    # small weights
            pl.BlockSpec((DC, hidden), lambda i, j: (j, 0)),     # encoder W1
            pl.BlockSpec((hidden, DC), lambda i, j: (0, j)),     # decoder W2
            pl.BlockSpec((1, DC), lambda i, j: (0, j)),          # decoder b2
        ],
        out_specs=pl.BlockSpec((BT, 128), lambda i, j: (i, 0)),
        scratch_shapes=[
            pltpu.VMEM((BT, hidden), jnp.float32),   # encoder pre-act accumulator
            pltpu.VMEM((BT, 1), jnp.float32),        # log-likelihood row sums
        ],
        compiler_params=pltpu.CompilerParams(
            dimension_semantics=("parallel", "arbitrary"),
            vmem_limit_bytes=vmem_limit),
    )(S, I_pad, w_small, we1, wd2, bd2)

    # final tiny reductions over the TRUE batch (padded rows never read)
    x_q_t = out[:B, :dim_x]
    v_t = out[:B, dim_x:2 * dim_x]
    E_ll = jnp.mean(out[:B, 2 * dim_x])
    E_kl = jnp.mean(out[:B, 2 * dim_x + 1])
    E = E_ll - _KL_BETA * E_kl
    if _REGULARIZATION:
        E = E - jnp.mean(out[:B, 2 * dim_x + 2])

    return {
        "E": E,
        "E_ll": E_ll,     # .detach() is a no-op for forward values
        "E_kl": E_kl,
        "x_q_t": x_q_t,
        "v_t": v_t,
    }


if __name__ == "__main__":
    key = jax.random.PRNGKey(0)
    kI, kx1, kx2, ku, keh, kex, kp = jax.random.split(key, 7)

    B, C, H, W = 2, 3, 16, 16
    dim_x, dim_xhat, hidden = 4, 4, 32
    D_img = C * H * W

    I_t = jax.random.normal(kI, (B, C, H, W), jnp.float32)
    x_q_tn1 = jax.random.normal(kx1, (B, dim_x), jnp.float32)
    x_q_tn2 = jax.random.normal(kx2, (B, dim_x), jnp.float32)
    u_tn1 = jax.random.normal(ku, (B, dim_x), jnp.float32)
    dt = jnp.full((B, 1), 0.1, jnp.float32)
    # rsample noise is generated outside the kernel for determinism
    eps_xhat = jax.random.normal(keh, (B, dim_xhat), jnp.float32)
    eps_x = jax.random.normal(kex, (B, dim_x), jnp.float32)

    params = init_params(kp, dim_x, dim_xhat, D_img, hidden)

    out = newtonian_vae_v2_derivation_cell(
        params, I_t, x_q_tn1, x_q_tn2, u_tn1, dt, eps_xhat, eps_x)
    jax.block_until_ready(out)
    print("KERNEL_OK")
</pallas_src>

<mosaic_0001>
module attributes {stable_mosaic.version = 11 : i64} {
  func.func @kernel(%arg0: i32, %arg1: i32, %arg2: memref<8x128xf32, #tpu.memory_space<vmem>>, %arg3: memref<8x768xf32, #tpu.memory_space<vmem>>, %arg4: memref<160x128xf32, #tpu.memory_space<vmem>>, %arg5: memref<768x32xbf16, #tpu.memory_space<vmem>>, %arg6: memref<32x768xbf16, #tpu.memory_space<vmem>>, %arg7: memref<1x768xf32, #tpu.memory_space<vmem>>, %arg8: memref<8x128xf32, #tpu.memory_space<vmem>>, %arg9: memref<8x32xf32, #tpu.memory_space<vmem>>, %arg10: memref<8x1xf32, #tpu.memory_space<vmem>>) attributes {dimension_semantics = [#tpu.dimension_semantics<parallel>, #tpu.dimension_semantics<arbitrary>], iteration_bounds = array<i64: 1, 1>, scalar_prefetch = 0 : i64, scratch_operands = 2 : i64, tpu.core_type = #tpu.core_type<tc>, window_params = [{transform_indices = @transform_0, window_bounds = array<i64: 8, 128>}, {transform_indices = @transform_1, window_bounds = array<i64: 8, 768>}, {pipeline_mode = #tpu.pipeline_mode<synchronous>, transform_indices = @transform_2, window_bounds = array<i64: 160, 128>}, {transform_indices = @transform_3, window_bounds = array<i64: 768, 32>}, {transform_indices = @transform_4, window_bounds = array<i64: 32, 768>}, {transform_indices = @transform_5, window_bounds = array<i64: 1, 768>}, {transform_indices = @transform_6, window_bounds = array<i64: 8, 128>}]} {
    %c0 = arith.constant 0 : index
    %c0_0 = arith.constant 0 : index
    %0 = vector.load %arg2[%c0, %c0_0] : memref<8x128xf32, #tpu.memory_space<vmem>>, vector<8x128xf32>
    %1 = vector.extract_strided_slice %0 {offsets = [0, 0], sizes = [8, 4], strides = [1, 1]} : vector<8x128xf32> to vector<8x4xf32>
    %2 = vector.extract_strided_slice %0 {offsets = [0, 4], sizes = [8, 4], strides = [1, 1]} : vector<8x128xf32> to vector<8x4xf32>
    %3 = vector.extract_strided_slice %0 {offsets = [0, 8], sizes = [8, 4], strides = [1, 1]} : vector<8x128xf32> to vector<8x4xf32>
    %4 = vector.extract_strided_slice %0 {offsets = [0, 12], sizes = [8, 1], strides = [1, 1]} : vector<8x128xf32> to vector<8x1xf32>
    %5 = vector.extract_strided_slice %0 {offsets = [0, 13], sizes = [8, 4], strides = [1, 1]} : vector<8x128xf32> to vector<8x4xf32>
    %6 = vector.extract_strided_slice %0 {offsets = [0, 17], sizes = [8, 4], strides = [1, 1]} : vector<8x128xf32> to vector<8x4xf32>
    %7 = tpu.reciprocal %4 : vector<8x1xf32> -> vector<8x1xf32>
    %8 = arith.subf %1, %3 : vector<8x4xf32>
    %9 = vector.broadcast %7 : vector<8x1xf32> to vector<8x4xf32>
    %10 = arith.mulf %8, %9 : vector<8x4xf32>
    %11 = vector.extract_strided_slice %0 {offsets = [0, 0], sizes = [8, 8], strides = [1, 1]} : vector<8x128xf32> to vector<8x8xf32>
    %12 = tpu.concatenate %11, %10 in 1 : vector<8x8xf32>, vector<8x4xf32> -> vector<8x12xf32>
    %c0_1 = arith.constant 0 : index
    %c0_2 = arith.constant 0 : index
    %13 = vector.load %arg4[%c0_1, %c0_2] : memref<160x128xf32, #tpu.memory_space<vmem>>, vector<12x64xf32>
    %cst = arith.constant dense<0.000000e+00> : vector<8x64xf32>
    %14 = tpu.matmul %12, %13, %cst {dimension_numbers = #tpu.dot_dimension_numbers<[1], [0], [0], [1], [0, 0, 1, 1], [], []>} : vector<8x12xf32>, vector<12x64xf32>, vector<8x64xf32> -> vector<8x64xf32>
    %c16 = arith.constant 16 : index
    %c0_3 = arith.constant 0 : index
    %15 = vector.load %arg4[%c16, %c0_3] : memref<160x128xf32, #tpu.memory_space<vmem>>, vector<1x64xf32>
    %16 = vector.broadcast %15 : vector<1x64xf32> to vector<8x64xf32>
    %17 = arith.addf %14, %16 : vector<8x64xf32>
    %cst_4 = arith.constant 0.000000e+00 : f32
    %18 = vector.broadcast %cst_4 : f32 to vector<8x64xf32>
    %19 = arith.maximumf %17, %18 : vector<8x64xf32>
    %c24 = arith.constant 24 : index
    %c0_5 = arith.constant 0 : index
    %20 = vector.load %arg4[%c24, %c0_5] : memref<160x128xf32, #tpu.memory_space<vmem>>, vector<64x20xf32>
    %cst_6 = arith.constant dense<0.000000e+00> : vector<8x20xf32>
    %21 = tpu.matmul %19, %20, %cst_6 {dimension_numbers = #tpu.dot_dimension_numbers<[1], [0], [0], [1], [0, 0, 1, 1], [], []>} : vector<8x64xf32>, vector<64x20xf32>, vector<8x20xf32> -> vector<8x20xf32>
    %c88 = arith.constant 88 : index
    %c0_7 = arith.constant 0 : index
    %22 = vector.load %arg4[%c88, %c0_7] : memref<160x128xf32, #tpu.memory_space<vmem>>, vector<1x20xf32>
    %23 = vector.broadcast %22 : vector<1x20xf32> to vector<8x20xf32>
    %24 = arith.addf %21, %23 : vector<8x20xf32>
    %25 = vector.extract_strided_slice %24 {offsets = [0, 0], sizes = [8, 4], strides = [1, 1]} : vector<8x20xf32> to vector<8x4xf32>
    %26 = vector.extract_strided_slice %24 {offsets = [0, 4], sizes = [8, 4], strides = [1, 1]} : vector<8x20xf32> to vector<8x4xf32>
    %27 = math.exp %26 : vector<8x4xf32>
    %cst_8 = arith.constant 0.000000e+00 : f32
    %28 = vector.broadcast %cst_8 : f32 to vector<8x4xf32>
    %29 = arith.subf %28, %27 : vector<8x4xf32>
    %30 = vector.extract_strided_slice %24 {offsets = [0, 8], sizes = [8, 4], strides = [1, 1]} : vector<8x20xf32> to vector<8x4xf32>
    %31 = math.exp %30 : vector<8x4xf32>
    %32 = arith.mulf %25, %1 : vector<8x4xf32>
    %33 = arith.mulf %29, %10 : vector<8x4xf32>
    %34 = arith.addf %32, %33 : vector<8x4xf32>
    %35 = arith.mulf %31, %2 : vector<8x4xf32>
    %36 = arith.addf %34, %35 : vector<8x4xf32>
    %37 = vector.broadcast %4 : vector<8x1xf32> to vector<8x4xf32>
    %38 = arith.mulf %37, %36 : vector<8x4xf32>
    %39 = arith.addf %10, %38 : vector<8x4xf32>
    %40 = vector.extract_strided_slice %24 {offsets = [0, 12], sizes = [8, 4], strides = [1, 1]} : vector<8x20xf32> to vector<8x4xf32>
    %41 = vector.extract_strided_slice %24 {offsets = [0, 16], sizes = [8, 4], strides = [1, 1]} : vector<8x20xf32> to vector<8x4xf32>
    %42 = math.exp %41 : vector<8x4xf32>
    %43 = arith.mulf %42, %5 : vector<8x4xf32>
    %44 = arith.addf %40, %43 : vector<8x4xf32>
    %c96 = arith.constant 96 : index
    %c0_9 = arith.constant 0 : index
    %45 = vector.load %arg4[%c96, %c0_9] : memref<160x128xf32, #tpu.memory_space<vmem>>, vector<4x32xf32>
    %cst_10 = arith.constant dense<0.000000e+00> : vector<8x32xf32>
    %46 = tpu.matmul %44, %45, %cst_10 {dimension_numbers = #tpu.dot_dimension_numbers<[1], [0], [0], [1], [0, 0, 1, 1], [], []>} : vector<8x4xf32>, vector<4x32xf32>, vector<8x32xf32> -> vector<8x32xf32>
    %c104 = arith.constant 104 : index
    %c0_11 = arith.constant 0 : index
    %47 = vector.load %arg4[%c104, %c0_11] : memref<160x128xf32, #tpu.memory_space<vmem>>, vector<1x32xf32>
    %48 = vector.broadcast %47 : vector<1x32xf32> to vector<8x32xf32>
    %49 = arith.addf %46, %48 : vector<8x32xf32>
    %cst_12 = arith.constant 0.000000e+00 : f32
    %50 = vector.broadcast %cst_12 : f32 to vector<8x32xf32>
    %51 = arith.maximumf %49, %50 : vector<8x32xf32>
    %c0_i32 = arith.constant 0 : i32
    %52 = arith.cmpi eq, %arg1, %c0_i32 : i32
    %53 = arith.extui %52 : i1 to i32
    %c0_i32_13 = arith.constant 0 : i32
    %54 = arith.cmpi ne, %53, %c0_i32_13 : i32
    scf.if %54 {
      %cst_39 = arith.constant 0.000000e+00 : f32
      %86 = vector.broadcast %cst_39 : f32 to vector<8x32xf32>
      %c0_40 = arith.constant 0 : index
      %c0_41 = arith.constant 0 : index
      %87 = vector.load %arg9[%c0_40, %c0_41] : memref<8x32xf32, #tpu.memory_space<vmem>>, vector<8x32xf32>
      tpu.vector_store %arg9[%c0_40, %c0_41], %86 {strides = array<i32>} : memref<8x32xf32, #tpu.memory_space<vmem>>, vector<8x32xf32>,
      %cst_42 = arith.constant 0.000000e+00 : f32
      %88 = vector.broadcast %cst_42 : f32 to vector<8x1xf32>
      %c0_43 = arith.constant 0 : index
      %c0_44 = arith.constant 0 : index
      %89 = vector.load %arg10[%c0_43, %c0_44] : memref<8x1xf32, #tpu.memory_space<vmem>>, vector<8x1xf32>
      tpu.vector_store %arg10[%c0_43, %c0_44], %88 {strides = array<i32>} : memref<8x1xf32, #tpu.memory_space<vmem>>, vector<8x1xf32>,
    } else {
    }
    %c0_14 = arith.constant 0 : index
    %c0_15 = arith.constant 0 : index
    %55 = vector.load %arg3[%c0_14, %c0_15] : memref<8x768xf32, #tpu.memory_space<vmem>>, vector<8x768xf32>
    %c0_16 = arith.constant 0 : index
    %c0_17 = arith.constant 0 : index
    %56 = vector.load %arg9[%c0_16, %c0_17] : memref<8x32xf32, #tpu.memory_space<vmem>>, vector<8x32xf32>
    %57 = arith.truncf %55 : vector<8x768xf32> to vector<8x768xbf16>
    %c0_18 = arith.constant 0 : index
    %c0_19 = arith.constant 0 : index
    %58 = vector.load %arg5[%c0_18, %c0_19] : memref<768x32xbf16, #tpu.memory_space<vmem>>, vector<768x32xbf16>
    %cst_20 = arith.constant dense<0.000000e+00> : vector<8x32xf32>
    %59 = tpu.matmul %57, %58, %cst_20 {dimension_numbers = #tpu.dot_dimension_numbers<[1], [0], [0], [1], [0, 0, 1, 1], [], []>} : vector<8x768xbf16>, vector<768x32xbf16>, vector<8x32xf32> -> vector<8x32xf32>
    %60 = arith.addf %56, %59 : vector<8x32xf32>
    %c0_21 = arith.constant 0 : index
    %c0_22 = arith.constant 0 : index
    %61 = vector.load %arg9[%c0_21, %c0_22] : memref<8x32xf32, #tpu.memory_space<vmem>>, vector<8x32xf32>
    tpu.vector_store %arg9[%c0_21, %c0_22], %60 {strides = array<i32>} : memref<8x32xf32, #tpu.memory_space<vmem>>, vector<8x32xf32>,
    %62 = arith.truncf %51 : vector<8x32xf32> to vector<8x32xbf16>
    %c0_23 = arith.constant 0 : index
    %c0_24 = arith.constant 0 : index
    %63 = vector.load %arg6[%c0_23, %c0_24] : memref<32x768xbf16, #tpu.memory_space<vmem>>, vector<32x768xbf16>
    %cst_25 = arith.constant dense<0.000000e+00> : vector<8x768xf32>
    %64 = tpu.matmul %62, %63, %cst_25 {dimension_numbers = #tpu.dot_dimension_numbers<[1], [0], [0], [1], [0, 0, 1, 1], [], []>} : vector<8x32xbf16>, vector<32x768xbf16>, vector<8x768xf32> -> vector<8x768xf32>
    %c0_26 = arith.constant 0 : index
    %c0_27 = arith.constant 0 : index
    %65 = vector.load %arg7[%c0_26, %c0_27] : memref<1x768xf32, #tpu.memory_space<vmem>>, vector<1x768xf32>
    %66 = vector.broadcast %65 : vector<1x768xf32> to vector<8x768xf32>
    %67 = arith.addf %64, %66 : vector<8x768xf32>
    %68 = arith.subf %55, %67 : vector<8x768xf32>
    %69 = arith.mulf %68, %68 : vector<8x768xf32>
    %cst_28 = arith.constant 1.000000e+00 : f32
    %70 = vector.broadcast %cst_28 : f32 to vector<8x768xf32>
    %71 = arith.mulf %69, %70 : vector<8x768xf32>
    %cst_29 = arith.constant 1.83787704 : f32
    %72 = vector.broadcast %cst_29 : f32 to vector<8x768xf32>
    %73 = arith.addf %71, %72 : vector<8x768xf32>
    %cst_30 = arith.constant -5.000000e-01 : f32
    %74 = vector.broadcast %cst_30 : f32 to vector<8x768xf32>
    %75 = arith.mulf %74, %73 : vector<8x768xf32>
    %cst_31 = arith.constant 0.000000e+00 : f32
    %76 = vector.broadcast %cst_31 : f32 to vector<8x768xf32>
    %77 = arith.subf %75, %76 : vector<8x768xf32>
    %c0_32 = arith.constant 0 : index
    %c0_33 = arith.constant 0 : index
    %78 = vector.load %arg10[%c0_32, %c0_33] : memref<8x1xf32, #tpu.memory_space<vmem>>, vector<8x1xf32>
    %cst_34 = arith.constant dense<0.000000e+00> : vector<8xf32>
    %79 = vector.multi_reduction <add>, %77, %cst_34 [1] : vector<8x768xf32> to vector<8xf32>
    %80 = vector.shape_cast %79 : vector<8xf32> to vector<8x1xf32>
    %81 = arith.addf %78, %80 : vector<8x1xf32>
    %c0_35 = arith.constant 0 : index
    %c0_36 = arith.constant 0 : index
    %82 = vector.load %arg10[%c0_35, %c0_36] : memref<8x1xf32, #tpu.memory_space<vmem>>, vector<8x1xf32>
    tpu.vector_store %arg10[%c0_35, %c0_36], %81 {strides = array<i32>} : memref<8x1xf32, #tpu.memory_space<vmem>>, vector<8x1xf32>,
    %c0_i32_37 = arith.constant 0 : i32
    %83 = arith.cmpi eq, %arg1, %c0_i32_37 : i32
    %84 = arith.extui %83 : i1 to i32
    %c0_i32_38 = arith.constant 0 : i32
    %85 = arith.cmpi ne, %84, %c0_i32_38 : i32
    scf.if %85 {
      %c0_39 = arith.constant 0 : index
      %c0_40 = arith.constant 0 : index
      %86 = vector.load %arg9[%c0_39, %c0_40] : memref<8x32xf32, #tpu.memory_space<vmem>>, vector<8x32xf32>
      %c152 = arith.constant 152 : index
      %c0_41 = arith.constant 0 : index
      %87 = vector.load %arg4[%c152, %c0_41] : memref<160x128xf32, #tpu.memory_space<vmem>>, vector<1x32xf32>
      %88 = vector.broadcast %87 : vector<1x32xf32> to vector<8x32xf32>
      %89 = arith.addf %86, %88 : vector<8x32xf32>
      %cst_42 = arith.constant 0.000000e+00 : f32
      %90 = vector.broadcast %cst_42 : f32 to vector<8x32xf32>
      %91 = arith.maximumf %89, %90 : vector<8x32xf32>
      %c112 = arith.constant 112 : index
      %c0_43 = arith.constant 0 : index
      %92 = vector.load %arg4[%c112, %c0_43] : memref<160x128xf32, #tpu.memory_space<vmem>>, vector<32x8xf32>
      %cst_44 = arith.constant dense<0.000000e+00> : vector<8x8xf32>
      %93 = tpu.matmul %91, %92, %cst_44 {dimension_numbers = #tpu.dot_dimension_numbers<[1], [0], [0], [1], [0, 0, 1, 1], [], []>} : vector<8x32xf32>, vector<32x8xf32>, vector<8x8xf32> -> vector<8x8xf32>
      %c144 = arith.constant 144 : index
      %c0_45 = arith.constant 0 : index
      %94 = vector.load %arg4[%c144, %c0_45] : memref<160x128xf32, #tpu.memory_space<vmem>>, vector<1x8xf32>
      %95 = vector.broadcast %94 : vector<1x8xf32> to vector<8x8xf32>
      %96 = arith.addf %93, %95 : vector<8x8xf32>
      %97 = vector.extract_strided_slice %96 {offsets = [0, 0], sizes = [8, 4], strides = [1, 1]} : vector<8x8xf32> to vector<8x4xf32>
      %98 = vector.extract_strided_slice %96 {offsets = [0, 4], sizes = [8, 4], strides = [1, 1]} : vector<8x8xf32> to vector<8x4xf32>
      %99 = math.exp %98 : vector<8x4xf32>
      %100 = vector.broadcast %4 : vector<8x1xf32> to vector<8x4xf32>
      %101 = arith.mulf %100, %39 : vector<8x4xf32>
      %102 = arith.addf %1, %101 : vector<8x4xf32>
      %cst_46 = arith.constant -2.30258512 : f32
      %103 = vector.broadcast %cst_46 : f32 to vector<8x4xf32>
      %104 = arith.subf %103, %98 : vector<8x4xf32>
      %105 = arith.mulf %99, %99 : vector<8x4xf32>
      %106 = arith.subf %97, %102 : vector<8x4xf32>
      %107 = arith.mulf %106, %106 : vector<8x4xf32>
      %108 = arith.addf %105, %107 : vector<8x4xf32>
      %cst_47 = arith.constant 2.000000e-02 : f32
      %109 = vector.broadcast %cst_47 : f32 to vector<8x4xf32>
      %110 = arith.divf %108, %109 : vector<8x4xf32>
      %111 = arith.addf %104, %110 : vector<8x4xf32>
      %cst_48 = arith.constant 5.000000e-01 : f32
      %112 = vector.broadcast %cst_48 : f32 to vector<8x4xf32>
      %113 = arith.subf %111, %112 : vector<8x4xf32>
      %cst_49 = arith.constant dense<0.000000e+00> : vector<8xf32>
      %114 = vector.multi_reduction <add>, %113, %cst_49 [1] : vector<8x4xf32> to vector<8xf32>
      %115 = vector.shape_cast %114 : vector<8xf32> to vector<8x1xf32>
      %116 = arith.mulf %99, %6 : vector<8x4xf32>
      %117 = arith.addf %97, %116 : vector<8x4xf32>
      %c0_50 = arith.constant 0 : index
      %c0_51 = arith.constant 0 : index
      %118 = vector.load %arg10[%c0_50, %c0_51] : memref<8x1xf32, #tpu.memory_space<vmem>>, vector<8x1xf32>
      %cst_52 = arith.constant 0.000000e+00 : f32
      %119 = vector.broadcast %cst_52 : f32 to vector<8x118xf32>
      %120 = tpu.concatenate %117, %39, %118, %115, %119 in 1 : vector<8x4xf32>, vector<8x4xf32>, vector<8x1xf32>, vector<8x1xf32>, vector<8x118xf32> -> vector<8x128xf32>
      %c0_53 = arith.constant 0 : index
      %c0_54 = arith.constant 0 : index
      %121 = vector.load %arg8[%c0_53, %c0_54] : memref<8x128xf32, #tpu.memory_space<vmem>>, vector<8x128xf32>
      tpu.vector_store %arg8[%c0_53, %c0_54], %120 {strides = array<i32>} : memref<8x128xf32, #tpu.memory_space<vmem>>, vector<8x128xf32>,
    } else {
    }
    return
  }
  func.func @transform_0(%arg0: i32, %arg1: i32) -> (i32, i32) {
    %c0_i32 = arith.constant 0 : i32
    %c0_i32_0 = arith.constant 0 : i32
    return %arg0, %c0_i32 : i32, i32
  }
  func.func @transform_1(%arg0: i32, %arg1: i32) -> (i32, i32) {
    %c0_i32 = arith.constant 0 : i32
    return %arg0, %arg1 : i32, i32
  }
  func.func @transform_2(%arg0: i32, %arg1: i32) -> (i32, i32) {
    %c0_i32 = arith.constant 0 : i32
    %c0_i32_0 = arith.constant 0 : i32
    %c0_i32_1 = arith.constant 0 : i32
    return %c0_i32, %c0_i32_0 : i32, i32
  }
  func.func @transform_3(%arg0: i32, %arg1: i32) -> (i32, i32) {
    %c0_i32 = arith.constant 0 : i32
    %c0_i32_0 = arith.constant 0 : i32
    return %arg1, %c0_i32 : i32, i32
  }
  func.func @transform_4(%arg0: i32, %arg1: i32) -> (i32, i32) {
    %c0_i32 = arith.constant 0 : i32
    %c0_i32_0 = arith.constant 0 : i32
    return %c0_i32, %arg1 : i32, i32
  }
  func.func @transform_5(%arg0: i32, %arg1: i32) -> (i32, i32) {
    %c0_i32 = arith.constant 0 : i32
    %c0_i32_0 = arith.constant 0 : i32
    return %c0_i32, %arg1 : i32, i32
  }
  func.func @transform_6(%arg0: i32, %arg1: i32) -> (i32, i32) {
    %c0_i32 = arith.constant 0 : i32
    %c0_i32_0 = arith.constant 0 : i32
    return %arg0, %c0_i32 : i32, i32
  }
}

</mosaic_0001>

<llo_original>
// kernel: tpu_custom_call.1
$region0: #{tpu_custom_call.1}
  #allocation0 [shape = 'u32[]', space=smem, size = 0x4, offset = 0x4, fixed_abs, tag = 'smem constant byte address 0x4 - core index']
  #allocation1 [shape = 'u32[144,128]{1,0:T(1,128)}', space=vmem, size = 0x12000, scoped, tag = 'internal scratch']
  #allocation2 [shape = 'f32[8,32]{1,0:T(8,128)}', space=vmem, size = 0x1000, scoped, tag = 'scratch operand']
  #allocation3 [shape = 'f32[8,1]{1,0:T(8,128)}', space=vmem, size = 0x1000, scoped, tag = 'scratch operand']
  %s0 = inlined_call_operand.vmem [shape: f32[8,128], index: 0, kind: input, shape index: {}]
  %s1 = inlined_call_operand.vmem [shape: f32[8,768], index: 1, kind: input, shape index: {}]
  %s2 = inlined_call_operand.vmem [shape: f32[160,128], index: 2, kind: input, shape index: {}]
  %s3 = inlined_call_operand.vmem [shape: bf16[768,32], index: 3, kind: input, shape index: {}]
  %s4 = inlined_call_operand.vmem [shape: bf16[32,768], index: 4, kind: input, shape index: {}]
  %s5 = inlined_call_operand.vmem [shape: f32[1,768], index: 5, kind: input, shape index: {}]
  %s6 = inlined_call_operand.hbm [shape: f32[8,128], index: 6, kind: output, shape index: {}]
  %s7 = sld [smem:[#allocation0]]
  $region42: #{tpu_custom_call.1} parent=0
    _
  %s9 = ssub.s32 1, %s7
  %s10 = scalar_select 0, %s9, %s7
  $region1: #{tpu_custom_call.1} parent=0
    #allocation4 [shape = 'u8[4096]{0}', space=vmem, size = 0x1000, scoped, tag = 'output window, operand 0, single buffered']
    #allocation5 [shape = 's32[1]{0}', space=sflag, size = 0x4, scoped, tag = 'scoped memory for tpu_custom_call.1']
    %11 = vsyncpa [#allocation5], 0
    // Predicated region
    $region2: #{tpu_custom_call.1} parent=1 // pred_check
      _
    $region3: #{tpu_custom_call.1} parent=1 // pred_check_branch
      %13 = sbr.rel (0) target = $region5
    $region4: #{tpu_custom_call.1} parent=1 // pred_region
      _
    $region5: #{tpu_custom_call.1} parent=1 // pred_fallthru
      _
    // Predicated region
    $region6: #{tpu_custom_call.1} parent=1 // pred_check
      _
    $region7: #{tpu_custom_call.1} parent=1 // pred_check_branch
      %15 = sbr.rel (0) target = $region9
    $region8: #{tpu_custom_call.1} parent=1 // pred_region
      _
    $region9: #{tpu_custom_call.1} parent=1 // pred_fallthru
      _
    // Predicated region
    $region10: #{tpu_custom_call.1} parent=1 // pred_check
      _
    $region11: #{tpu_custom_call.1} parent=1 // pred_check_branch
      %17 = sbr.rel (0) target = $region13
    $region12: #{tpu_custom_call.1} parent=1 // pred_region
      _
    $region13: #{tpu_custom_call.1} parent=1 // pred_fallthru
      _
    // Predicated region
    $region14: #{tpu_custom_call.1} parent=1 // pred_check
      _
    $region15: #{tpu_custom_call.1} parent=1 // pred_check_branch
      %19 = sbr.rel (0) target = $region17
    $region16: #{tpu_custom_call.1} parent=1 // pred_region
      _
    $region17: #{tpu_custom_call.1} parent=1 // pred_fallthru
      _
    // Predicated region
    $region18: #{tpu_custom_call.1} parent=1 // pred_check
      _
    $region19: #{tpu_custom_call.1} parent=1 // pred_check_branch
      %21 = sbr.rel (0) target = $region21
    $region20: #{tpu_custom_call.1} parent=1 // pred_region
      _
    $region21: #{tpu_custom_call.1} parent=1 // pred_fallthru
      _
    // Predicated region
    $region22: #{tpu_custom_call.1} parent=1 // pred_check
      _
    $region23: #{tpu_custom_call.1} parent=1 // pred_check_branch
      %23 = sbr.rel (0) target = $region25
    $region24: #{tpu_custom_call.1} parent=1 // pred_region
      _
    $region25: #{tpu_custom_call.1} parent=1 // pred_fallthru
      _
    %v25 = vld [vmem:[%s0] sm:$0xff]
    %v26 = vrcp.pop %v25
    %28 = vrot.lane.b32.xlu0 %v25, 120
    %v29 = vpop.permute.xlu0 %28
    %v31 = vsub.f32 %v25, %v29
    %33 = vset.pattern.permute.xlu0 12
    %34 = vperm.xlu0 %33, %v26
    %v35 = vpop.permute.xlu0 %34
    %v37 = vmul.f32 %v31, %v35
    %39 = vrot.lane.b32.xlu0 %v37, 8
    %v40 = vpop.permute.xlu0 %39
    %vm42 = vcmask 64512
    %v43 = vsel %vm42, %v25, %v40
    %v44 = vld [vmem:[%s2] sm:$0xff]
    %v45 = vld [vmem:[%s2 + $0x8] sm:$0xf]
    %v46 = vld [vmem:[%s2 + $0x10] sm:$0x1]
    %v47 = vlaneseq
    %v48 = vshrl.u32 %v47, 7
    %v49 = vsub.s32 0, %v48
    %v50 = vrot.slane %v46, %v49
    %vm51 = vcmask 97280
    %v53 = vsel %vm51, %v43, 0
    %vm55 = vcmask 1043456
    %v57 = vsel %vm55, %v45, 0
    %59 = vmatprep.subr.mxu0 0.0
    %60 = vmatpush1.msra.mxu0 0.0
    %61 = vmatprep.subr.mxu0 0.0
    %62 = vmatpush1.msra.mxu0 0.0
    %63 = vmatprep.subr.mxu0 0.0
    %64 = vmatpush1.msra.mxu0 0.0
    %65 = vmatprep.subr.mxu0 0.0
    %66 = vmatpush1.msra.mxu0 0.0
    %67 = vmatprep.subr.mxu0 0.0
    %68 = vmatpush1.msra.mxu0 0.0
    %69 = vmatprep.subr.mxu0 0.0
    %70 = vmatpush1.msra.mxu0 0.0
    %71 = vmatprep.subr.mxu0 0.0
    %72 = vmatpush1.msra.mxu0 0.0
    %73 = vmatprep.subr.mxu0 0.0
    %74 = vmatpush1.msra.mxu0 0.0
    %75 = vmatprep.subr.mxu0 0.0
    %76 = vmatpush1.msra.mxu0 0.0
    %77 = vmatprep.subr.mxu0 0.0
    %78 = vmatpush1.msra.mxu0 0.0
    %79 = vmatprep.subr.mxu0 0.0
    %80 = vmatpush1.msra.mxu0 0.0
    %81 = vmatprep.subr.mxu0 0.0
    %82 = vmatpush1.msra.mxu0 0.0
    %83 = vmatprep.subr.mxu0 0.0
    %84 = vmatpush1.msra.mxu0 0.0
    %85 = vmatprep.subr.mxu0 0.0
    %86 = vmatpush1.msra.mxu0 0.0
    %87 = vmatprep.subr.mxu0 0.0
    %88 = vmatpush1.msra.mxu0 %v57
    %89 = vmatprep.subr.mxu0 0.0
    %90 = vmatpush1.msra.mxu0 %v44
    %91 = vmatprep.subr.mxu0 0.0
    %92 = vmatpush2.msra.mxu0 0.0
    %93 = vmatprep.subr.mxu0 0.0
    %94 = vmatpush2.msra.mxu0 0.0
    %95 = vmatprep.subr.mxu0 0.0
    %96 = vmatpush2.msra.mxu0 0.0
    %97 = vmatprep.subr.mxu0 0.0
    %98 = vmatpush2.msra.mxu0 0.0
    %99 = vmatprep.subr.mxu0 0.0
    %100 = vmatpush2.msra.mxu0 0.0
    %101 = vmatprep.subr.mxu0 0.0
    %102 = vmatpush2.msra.mxu0 0.0
    %103 = vmatprep.subr.mxu0 0.0
    %104 = vmatpush2.msra.mxu0 0.0
    %105 = vmatprep.subr.mxu0 0.0
    %106 = vmatpush2.msra.mxu0 0.0
    %107 = vmatprep.subr.mxu0 0.0
    %108 = vmatpush2.msra.mxu0 0.0
    %109 = vmatprep.subr.mxu0 0.0
    %110 = vmatpush2.msra.mxu0 0.0
    %111 = vmatprep.subr.mxu0 0.0
    %112 = vmatpush2.msra.mxu0 0.0
    %113 = vmatprep.subr.mxu0 0.0
    %114 = vmatpush2.msra.mxu0 0.0
    %115 = vmatprep.subr.mxu0 0.0
    %116 = vmatpush2.msra.mxu0 0.0
    %117 = vmatprep.subr.mxu0 0.0
    %118 = vmatpush2.msra.mxu0 0.0
    %119 = vmatprep.subr.mxu0 0.0
    %120 = vmatpush2.msra.mxu0 0.0
    %121 = vmatprep.subr.mxu0 0.0
    %122 = vmatpush2.msra.mxu0 0.0
    %123 = vmatprep.mubr.f32.mxu0 0.0
    %124 = vmatmul.mubr.f32.gmra.mxu0 %v53
    %v125 = vpop.f32.mrf.mxu0
    %v126 = vadd.f32 %v50, %v125
    %v127 = vpop.f32.mrf.mxu0
    %128 = vdwg.mxu0
    %v129 = vmax.f32 %v126, 0.0
    %v130 = vld [vmem:[%s2 + $0x18] sm:$0xff]
    %v131 = vld [vmem:[%s2 + $0x20] sm:$0xff]
    %v132 = vld [vmem:[%s2 + $0x28] sm:$0xff]
    %v133 = vld [vmem:[%s2 + $0x30] sm:$0xff]
    %v134 = vld [vmem:[%s2 + $0x38] sm:$0xff]
    %v135 = vld [vmem:[%s2 + $0x40] sm:$0xff]
    %v136 = vld [vmem:[%s2 + $0x48] sm:$0xff]
    %v137 = vld [vmem:[%s2 + $0x50] sm:$0xff]
    %v138 = vld [vmem:[%s2 + $0x58] sm:$0x1]
    %v139 = vlaneseq
    %v140 = vshrl.u32 %v139, 7
    %v141 = vsub.s32 0, %v140
    %v142 = vrot.slane %v138, %v141
    %vm143 = vcmask 523264
    %v145 = vsel %vm143, %v129, 0
    %147 = vmatprep.subr.mxu0 0.0
    %148 = vmatpush1.msra.mxu0 0.0
    %149 = vmatprep.subr.mxu0 0.0
    %150 = vmatpush1.msra.mxu0 0.0
    %151 = vmatprep.subr.mxu0 0.0
    %152 = vmatpush1.msra.mxu0 0.0
    %153 = vmatprep.subr.mxu0 0.0
    %154 = vmatpush1.msra.mxu0 0.0
    %155 = vmatprep.subr.mxu0 0.0
    %156 = vmatpush1.msra.mxu0 0.0
    %157 = vmatprep.subr.mxu0 0.0
    %158 = vmatpush1.msra.mxu0 0.0
    %159 = vmatprep.subr.mxu0 0.0
    %160 = vmatpush1.msra.mxu0 0.0
    %161 = vmatprep.subr.mxu0 0.0
    %162 = vmatpush1.msra.mxu0 0.0
    %163 = vmatprep.subr.mxu0 0.0
    %164 = vmatpush1.msra.mxu0 %v137
    %165 = vmatprep.subr.mxu0 0.0
    %166 = vmatpush1.msra.mxu0 %v136
    %167 = vmatprep.subr.mxu0 0.0
    %168 = vmatpush1.msra.mxu0 %v135
    %169 = vmatprep.subr.mxu0 0.0
    %170 = vmatpush1.msra.mxu0 %v134
    %171 = vmatprep.subr.mxu0 0.0
    %172 = vmatpush1.msra.mxu0 %v133
    %173 = vmatprep.subr.mxu0 0.0
    %174 = vmatpush1.msra.mxu0 %v132
    %175 = vmatprep.subr.mxu0 0.0
    %176 = vmatpush1.msra.mxu0 %v131
    %177 = vmatprep.subr.mxu0 0.0
    %178 = vmatpush1.msra.mxu0 %v130
    %179 = vmatprep.subr.mxu0 0.0
    %180 = vmatpush2.msra.mxu0 0.0
    %181 = vmatprep.subr.mxu0 0.0
    %182 = vmatpush2.msra.mxu0 0.0
    %183 = vmatprep.subr.mxu0 0.0
    %184 = vmatpush2.msra.mxu0 0.0
    %185 = vmatprep.subr.mxu0 0.0
    %186 = vmatpush2.msra.mxu0 0.0
    %187 = vmatprep.subr.mxu0 0.0
    %188 = vmatpush2.msra.mxu0 0.0
    %189 = vmatprep.subr.mxu0 0.0
    %190 = vmatpush2.msra.mxu0 0.0
    %191 = vmatprep.subr.mxu0 0.0
    %192 = vmatpush2.msra.mxu0 0.0
    %193 = vmatprep.subr.mxu0 0.0
    %194 = vmatpush2.msra.mxu0 0.0
    %195 = vmatprep.subr.mxu0 0.0
    %196 = vmatpush2.msra.mxu0 0.0
    %197 = vmatprep.subr.mxu0 0.0
    %198 = vmatpush2.msra.mxu0 0.0
    %199 = vmatprep.subr.mxu0 0.0
    %200 = vmatpush2.msra.mxu0 0.0
    %201 = vmatprep.subr.mxu0 0.0
    %202 = vmatpush2.msra.mxu0 0.0
    %203 = vmatprep.subr.mxu0 0.0
    %204 = vmatpush2.msra.mxu0 0.0
    %205 = vmatprep.subr.mxu0 0.0
    %206 = vmatpush2.msra.mxu0 0.0
    %207 = vmatprep.subr.mxu0 0.0
    %208 = vmatpush2.msra.mxu0 0.0
    %209 = vmatprep.subr.mxu0 0.0
    %210 = vmatpush2.msra.mxu0 0.0
    %211 = vmatprep.mubr.f32.mxu0 0.0
    %212 = vmatmul.mubr.f32.gmra.mxu0 %v145
    %v213 = vpop.f32.mrf.mxu0
    %v214 = vadd.f32 %v142, %v213
    %v215 = vpop.f32.mrf.mxu0
    %216 = vdwg.mxu0
    %v217 = vmul.f32 %v214, 1.442695
    %v218 = vpow.pop %v217
    %v219 = vsub.f32 0.0, %v218
    %v220 = vmul.f32 %v214, %v25
    %221 = vrot.lane.b32.xlu0 %v37, 4
    %v222 = vpop.permute.xlu0 %221
    %v224 = vmul.f32 %v219, %v222
    %226 = vrot.lane.b32.xlu0 %v224, 124
    %v227 = vpop.permute.xlu0 %226
    %v229 = vadd.f32 %v220, %v227
    %230 = vrot.lane.b32.xlu0 %v25, 4
    %v231 = vpop.permute.xlu0 %230
    %v233 = vmul.f32 %v218, %v231
    %235 = vrot.lane.b32.xlu0 %v233, 120
    %v236 = vpop.permute.xlu0 %235
    %v238 = vadd.f32 %v229, %v236
    %239 = vset.pattern.permute.xlu0 12
    %240 = vperm.xlu0 %239, %v25
    %v241 = vpop.permute.xlu0 %240
    %v243 = vmul.f32 %v241, %v238
    %v244 = vadd.f32 %v37, %v243
    %245 = vrot.lane.b32.xlu0 %v25, 3
    %v246 = vpop.permute.xlu0 %245
    %v248 = vmul.f32 %v218, %v246
    %250 = vrot.lane.b32.xlu0 %v248, 124
    %v251 = vpop.permute.xlu0 %250
    %v253 = vadd.f32 %v214, %v251
    %v254 = vld [vmem:[%s2 + $0x60] sm:$0xf]
    %v255 = vld [vmem:[%s2 + $0x68] sm:$0x1]
    %v256 = vlaneseq
    %v257 = vshrl.u32 %v256, 7
    %v258 = vsub.s32 0, %v257
    %v259 = vrot.slane %v255, %v258
    %261 = vrot.lane.b32.xlu0 %v253, 116
    %v262 = vpop.permute.xlu0 %261
    %vm263 = vcmask 31744
    %v264 = vsel %vm263, %v262, 0
    %v267 = vsel %vm55, %v254, 0
    %269 = vmatprep.subr.mxu0 0.0
    %270 = vmatpush1.msra.mxu0 0.0
    %271 = vmatprep.subr.mxu0 0.0
    %272 = vmatpush1.msra.mxu0 0.0
    %273 = vmatprep.subr.mxu0 0.0
    %274 = vmatpush1.msra.mxu0 0.0
    %275 = vmatprep.subr.mxu0 0.0
    %276 = vmatpush1.msra.mxu0 0.0
    %277 = vmatprep.subr.mxu0 0.0
    %278 = vmatpush1.msra.mxu0 0.0
    %279 = vmatprep.subr.mxu0 0.0
    %280 = vmatpush1.msra.mxu0 0.0
    %281 = vmatprep.subr.mxu0 0.0
    %282 = vmatpush1.msra.mxu0 0.0
    %283 = vmatprep.subr.mxu0 0.0
    %284 = vmatpush1.msra.mxu0 0.0
    %285 = vmatprep.subr.mxu0 0.0
    %286 = vmatpush1.msra.mxu0 0.0
    %287 = vmatprep.subr.mxu0 0.0
    %288 = vmatpush1.msra.mxu0 0.0
    %289 = vmatprep.subr.mxu0 0.0
    %290 = vmatpush1.msra.mxu0 0.0
    %291 = vmatprep.subr.mxu0 0.0
    %292 = vmatpush1.msra.mxu0 0.0
    %293 = vmatprep.subr.mxu0 0.0
    %294 = vmatpush1.msra.mxu0 0.0
    %295 = vmatprep.subr.mxu0 0.0
    %296 = vmatpush1.msra.mxu0 0.0
    %297 = vmatprep.subr.mxu0 0.0
    %298 = vmatpush1.msra.mxu0 0.0
    %299 = vmatprep.subr.mxu0 0.0
    %300 = vmatpush1.msra.mxu0 %v267
    %301 = vmatprep.subr.mxu0 0.0
    %302 = vmatpush2.msra.mxu0 0.0
    %303 = vmatprep.subr.mxu0 0.0
    %304 = vmatpush2.msra.mxu0 0.0
    %305 = vmatprep.subr.mxu0 0.0
    %306 = vmatpush2.msra.mxu0 0.0
    %307 = vmatprep.subr.mxu0 0.0
    %308 = vmatpush2.msra.mxu0 0.0
    %309 = vmatprep.subr.mxu0 0.0
    %310 = vmatpush2.msra.mxu0 0.0
    %311 = vmatprep.subr.mxu0 0.0
    %312 = vmatpush2.msra.mxu0 0.0
    %313 = vmatprep.subr.mxu0 0.0
    %314 = vmatpush2.msra.mxu0 0.0
    %315 = vmatprep.subr.mxu0 0.0
    %316 = vmatpush2.msra.mxu0 0.0
    %317 = vmatprep.subr.mxu0 0.0
    %318 = vmatpush2.msra.mxu0 0.0
    %319 = vmatprep.subr.mxu0 0.0
    %320 = vmatpush2.msra.mxu0 0.0
    %321 = vmatprep.subr.mxu0 0.0
    %322 = vmatpush2.msra.mxu0 0.0
    %323 = vmatprep.subr.mxu0 0.0
    %324 = vmatpush2.msra.mxu0 0.0
    %325 = vmatprep.subr.mxu0 0.0
    %326 = vmatpush2.msra.mxu0 0.0
    %327 = vmatprep.subr.mxu0 0.0
    %328 = vmatpush2.msra.mxu0 0.0
    %329 = vmatprep.subr.mxu0 0.0
    %330 = vmatpush2.msra.mxu0 0.0
    %331 = vmatprep.subr.mxu0 0.0
    %332 = vmatpush2.msra.mxu0 0.0
    %333 = vmatprep.mubr.f32.mxu0 0.0
    %334 = vmatmul.mubr.f32.gmra.mxu0 %v264
    %v335 = vpop.f32.mrf.mxu0
    %v336 = vadd.f32 %v259, %v335
    %v337 = vpop.f32.mrf.mxu0
    %338 = vdwg.mxu0
    %v339 = vmax.f32 %v336, 0.0
    %p340 = scmp.eq.s32.totalorder 0, 0
    // Predicated region
    $region26: #{tpu_custom_call.1} parent=1 // pred_check
      %p341 = pneg %p340
    $region27: #{tpu_custom_call.1} parent=1 // pred_check_branch
      %343 = sbr.rel (%p341) target = $region29
    $region28: #{tpu_custom_call.1} parent=1 // pred_region
      %vm344 = vcmask 261120
      %345 = vst.msk [vmem:[#allocation2] sm:$0xff] %vm344, 0.0
      %vm346 = vcmask 7168
      %347 = vst.msk [vmem:[#allocation3] sm:$0xff] %vm346, 0.0
    $region29: #{tpu_custom_call.1} parent=1 // pred_fallthru
      _
    %v348 = vld [vmem:[%s1] sm:$0xff]
    %v349 = vld [vmem:[%s1 + $0x8] sm:$0xff]
    %v350 = vld [vmem:[%s1 + $0x10] sm:$0xff]
    %v351 = vld [vmem:[%s1 + $0x18] sm:$0xff]
    %v352 = vld [vmem:[%s1 + $0x20] sm:$0xff]
    %v353 = vld [vmem:[%s1 + $0x28] sm:$0xff]
    %v354 = vld [vmem:[#allocation2] sm:$0xff]
    %v355 = vpack.c.bf16 %v348, %v348
    %v356 = vpack.c.bf16 %v349, %v349
    %v357 = vpack.c.bf16 %v350, %v350
    %v358 = vpack.c.bf16 %v351, %v351
    %v359 = vpack.c.bf16 %v352, %v352
    %v360 = vpack.c.bf16 %v353, %v353
    %v361 = vld [vmem:[%s3] sm:$0xf]
    %v362 = vld [vmem:[%s3 + $0x4] sm:$0xf]
    %v363 = vld [vmem:[%s3 + $0x8] sm:$0xf]
    %v364 = vld [vmem:[%s3 + $0xc] sm:$0xf]
    %v365 = vld [vmem:[%s3 + $0x10] sm:$0xf]
    %v366 = vld [vmem:[%s3 + $0x14] sm:$0xf]
    %v367 = vld [vmem:[%s3 + $0x18] sm:$0xf]
    %v368 = vld [vmem:[%s3 + $0x1c] sm:$0xf]
    %v369 = vld [vmem:[%s3 + $0x20] sm:$0xf]
    %v370 = vld [vmem:[%s3 + $0x24] sm:$0xf]
    %v371 = vld [vmem:[%s3 + $0x28] sm:$0xf]
    %v372 = vld [vmem:[%s3 + $0x2c] sm:$0xf]
    %v373 = vld [vmem:[%s3 + $0x30] sm:$0xf]
    %v374 = vld [vmem:[%s3 + $0x34] sm:$0xf]
    %v375 = vld [vmem:[%s3 + $0x38] sm:$0xf]
    %v376 = vld [vmem:[%s3 + $0x3c] sm:$0xf]
    %v377 = vld [vmem:[%s3 + $0x40] sm:$0xf]
    %v378 = vld [vmem:[%s3 + $0x44] sm:$0xf]
    %v379 = vld [vmem:[%s3 + $0x48] sm:$0xf]
    %v380 = vld [vmem:[%s3 + $0x4c] sm:$0xf]
    %v381 = vld [vmem:[%s3 + $0x50] sm:$0xf]
    %v382 = vld [vmem:[%s3 + $0x54] sm:$0xf]
    %v383 = vld [vmem:[%s3 + $0x58] sm:$0xf]
    %v384 = vld [vmem:[%s3 + $0x5c] sm:$0xf]
    %v385 = vld [vmem:[%s3 + $0x60] sm:$0xf]
    %v386 = vld [vmem:[%s3 + $0x64] sm:$0xf]
    %v387 = vld [vmem:[%s3 + $0x68] sm:$0xf]
    %v388 = vld [vmem:[%s3 + $0x6c] sm:$0xf]
    %v389 = vld [vmem:[%s3 + $0x70] sm:$0xf]
    %v390 = vld [vmem:[%s3 + $0x74] sm:$0xf]
    %v391 = vld [vmem:[%s3 + $0x78] sm:$0xf]
    %v392 = vld [vmem:[%s3 + $0x7c] sm:$0xf]
    %v393 = vld [vmem:[%s3 + $0x80] sm:$0xf]
    %v394 = vld [vmem:[%s3 + $0x84] sm:$0xf]
    %v395 = vld [vmem:[%s3 + $0x88] sm:$0xf]
    %v396 = vld [vmem:[%s3 + $0x8c] sm:$0xf]
    %v397 = vld [vmem:[%s3 + $0x90] sm:$0xf]
    %v398 = vld [vmem:[%s3 + $0x94] sm:$0xf]
    %v399 = vld [vmem:[%s3 + $0x98] sm:$0xf]
    %v400 = vld [vmem:[%s3 + $0x9c] sm:$0xf]
    %v401 = vld [vmem:[%s3 + $0xa0] sm:$0xf]
    %v402 = vld [vmem:[%s3 + $0xa4] sm:$0xf]
    %v403 = vld [vmem:[%s3 + $0xa8] sm:$0xf]
    %v404 = vld [vmem:[%s3 + $0xac] sm:$0xf]
    %v405 = vld [vmem:[%s3 + $0xb0] sm:$0xf]
    %v406 = vld [vmem:[%s3 + $0xb4] sm:$0xf]
    %v407 = vld [vmem:[%s3 + $0xb8] sm:$0xf]
    %v408 = vld [vmem:[%s3 + $0xbc] sm:$0xf]
    %v409 = vld [vmem:[%s3 + $0xc0] sm:$0xf]
    %v410 = vld [vmem:[%s3 + $0xc4] sm:$0xf]
    %v411 = vld [vmem:[%s3 + $0xc8] sm:$0xf]
    %v412 = vld [vmem:[%s3 + $0xcc] sm:$0xf]
    %v413 = vld [vmem:[%s3 + $0xd0] sm:$0xf]
    %v414 = vld [vmem:[%s3 + $0xd4] sm:$0xf]
    %v415 = vld [vmem:[%s3 + $0xd8] sm:$0xf]
    %v416 = vld [vmem:[%s3 + $0xdc] sm:$0xf]
    %v417 = vld [vmem:[%s3 + $0xe0] sm:$0xf]
    %v418 = vld [vmem:[%s3 + $0xe4] sm:$0xf]
    %v419 = vld [vmem:[%s3 + $0xe8] sm:$0xf]
    %v420 = vld [vmem:[%s3 + $0xec] sm:$0xf]
    %v421 = vld [vmem:[%s3 + $0xf0] sm:$0xf]
    %v422 = vld [vmem:[%s3 + $0xf4] sm:$0xf]
    %v423 = vld [vmem:[%s3 + $0xf8] sm:$0xf]
    %v424 = vld [vmem:[%s3 + $0xfc] sm:$0xf]
    %v425 = vld [vmem:[%s3 + $0x100] sm:$0xf]
    %v426 = vld [vmem:[%s3 + $0x104] sm:$0xf]
    %v427 = vld [vmem:[%s3 + $0x108] sm:$0xf]
    %v428 = vld [vmem:[%s3 + $0x10c] sm:$0xf]
    %v429 = vld [vmem:[%s3 + $0x110] sm:$0xf]
    %v430 = vld [vmem:[%s3 + $0x114] sm:$0xf]
    %v431 = vld [vmem:[%s3 + $0x118] sm:$0xf]
    %v432 = vld [vmem:[%s3 + $0x11c] sm:$0xf]
    %v433 = vld [vmem:[%s3 + $0x120] sm:$0xf]
    %v434 = vld [vmem:[%s3 + $0x124] sm:$0xf]
    %v435 = vld [vmem:[%s3 + $0x128] sm:$0xf]
    %v436 = vld [vmem:[%s3 + $0x12c] sm:$0xf]
    %v437 = vld [vmem:[%s3 + $0x130] sm:$0xf]
    %v438 = vld [vmem:[%s3 + $0x134] sm:$0xf]
    %v439 = vld [vmem:[%s3 + $0x138] sm:$0xf]
    %v440 = vld [vmem:[%s3 + $0x13c] sm:$0xf]
    %v441 = vld [vmem:[%s3 + $0x140] sm:$0xf]
    %v442 = vld [vmem:[%s3 + $0x144] sm:$0xf]
    %v443 = vld [vmem:[%s3 + $0x148] sm:$0xf]
    %v444 = vld [vmem:[%s3 + $0x14c] sm:$0xf]
    %v445 = vld [vmem:[%s3 + $0x150] sm:$0xf]
    %v446 = vld [vmem:[%s3 + $0x154] sm:$0xf]
    %v447 = vld [vmem:[%s3 + $0x158] sm:$0xf]
    %v448 = vld [vmem:[%s3 + $0x15c] sm:$0xf]
    %v449 = vld [vmem:[%s3 + $0x160] sm:$0xf]
    %v450 = vld [vmem:[%s3 + $0x164] sm:$0xf]
    %v451 = vld [vmem:[%s3 + $0x168] sm:$0xf]
    %v452 = vld [vmem:[%s3 + $0x16c] sm:$0xf]
    %v453 = vld [vmem:[%s3 + $0x170] sm:$0xf]
    %v454 = vld [vmem:[%s3 + $0x174] sm:$0xf]
    %v455 = vld [vmem:[%s3 + $0x178] sm:$0xf]
    %v456 = vld [vmem:[%s3 + $0x17c] sm:$0xf]
    %v553 = vunpack.c.l.b16 %v361
    %v554 = vunpack.c.l.b16 %v362
    %v555 = vunpack.c.l.b16 %v363
    %v556 = vunpack.c.l.b16 %v364
    %v557 = vunpack.c.l.b16 %v365
    %v558 = vunpack.c.l.b16 %v366
    %v559 = vunpack.c.l.b16 %v367
    %v560 = vunpack.c.l.b16 %v368
    %v561 = vunpack.c.l.b16 %v369
    %v562 = vunpack.c.l.b16 %v370
    %v563 = vunpack.c.l.b16 %v371
    %v564 = vunpack.c.l.b16 %v372
    %v565 = vunpack.c.l.b16 %v373
    %v566 = vunpack.c.l.b16 %v374
    %v567 = vunpack.c.l.b16 %v375
    %v568 = vunpack.c.l.b16 %v376
    %v569 = vunpack.c.l.b16 %v377
    %v570 = vunpack.c.l.b16 %v378
    %v571 = vunpack.c.l.b16 %v379
    %v572 = vunpack.c.l.b16 %v380
    %v573 = vunpack.c.l.b16 %v381
    %v574 = vunpack.c.l.b16 %v382
    %v575 = vunpack.c.l.b16 %v383
    %v576 = vunpack.c.l.b16 %v384
    %v577 = vunpack.c.l.b16 %v385
    %v578 = vunpack.c.l.b16 %v386
    %v579 = vunpack.c.l.b16 %v387
    %v580 = vunpack.c.l.b16 %v388
    %v581 = vunpack.c.l.b16 %v389
    %v582 = vunpack.c.l.b16 %v390
    %v583 = vunpack.c.l.b16 %v391
    %v584 = vunpack.c.l.b16 %v392
    %v585 = vunpack.c.l.b16 %v393
    %v586 = vunpack.c.l.b16 %v394
    %v587 = vunpack.c.l.b16 %v395
    %v588 = vunpack.c.l.b16 %v396
    %v589 = vunpack.c.l.b16 %v397
    %v590 = vunpack.c.l.b16 %v398
    %v591 = vunpack.c.l.b16 %v399
    %v592 = vunpack.c.l.b16 %v400
    %v593 = vunpack.c.l.b16 %v401
    %v594 = vunpack.c.l.b16 %v402
    %v595 = vunpack.c.l.b16 %v403
    %v596 = vunpack.c.l.b16 %v404
    %v597 = vunpack.c.l.b16 %v405
    %v598 = vunpack.c.l.b16 %v406
    %v599 = vunpack.c.l.b16 %v407
    %v600 = vunpack.c.l.b16 %v408
    %v601 = vunpack.c.l.b16 %v409
    %v602 = vunpack.c.l.b16 %v410
    %v603 = vunpack.c.l.b16 %v411
    %v604 = vunpack.c.l.b16 %v412
    %v605 = vunpack.c.l.b16 %v413
    %v606 = vunpack.c.l.b16 %v414
    %v607 = vunpack.c.l.b16 %v415
    %v608 = vunpack.c.l.b16 %v416
    %v609 = vunpack.c.l.b16 %v417
    %v610 = vunpack.c.l.b16 %v418
    %v611 = vunpack.c.l.b16 %v419
    %v612 = vunpack.c.l.b16 %v420
    %v613 = vunpack.c.l.b16 %v421
    %v614 = vunpack.c.l.b16 %v422
    %v615 = vunpack.c.l.b16 %v423
    %v616 = vunpack.c.l.b16 %v424
    %v617 = vunpack.c.l.b16 %v425
    %v618 = vunpack.c.l.b16 %v426
    %v619 = vunpack.c.l.b16 %v427
    %v620 = vunpack.c.l.b16 %v428
    %v621 = vunpack.c.l.b16 %v429
    %v622 = vunpack.c.l.b16 %v430
    %v623 = vunpack.c.l.b16 %v431
    %v624 = vunpack.c.l.b16 %v432
    %v625 = vunpack.c.l.b16 %v433
    %v626 = vunpack.c.l.b16 %v434
    %v627 = vunpack.c.l.b16 %v435
    %v628 = vunpack.c.l.b16 %v436
    %v629 = vunpack.c.l.b16 %v437
    %v630 = vunpack.c.l.b16 %v438
    %v631 = vunpack.c.l.b16 %v439
    %v632 = vunpack.c.l.b16 %v440
    %v633 = vunpack.c.l.b16 %v441
    %v634 = vunpack.c.l.b16 %v442
    %v635 = vunpack.c.l.b16 %v443
    %v636 = vunpack.c.l.b16 %v444
    %v637 = vunpack.c.l.b16 %v445
    %v638 = vunpack.c.l.b16 %v446
    %v639 = vunpack.c.l.b16 %v447
    %v640 = vunpack.c.l.b16 %v448
    %v641 = vunpack.c.l.b16 %v449
    %v642 = vunpack.c.l.b16 %v450
    %v643 = vunpack.c.l.b16 %v451
    %v644 = vunpack.c.l.b16 %v452
    %v645 = vunpack.c.l.b16 %v453
    %v646 = vunpack.c.l.b16 %v454
    %v647 = vunpack.c.l.b16 %v455
    %v648 = vunpack.c.l.b16 %v456
    %v649 = vpack.c.b16 %v554, %v553
    %v650 = vpack.c.b16 %v556, %v555
    %v651 = vpack.c.b16 %v558, %v557
    %v652 = vpack.c.b16 %v560, %v559
    %v653 = vpack.c.b16 %v562, %v561
    %v654 = vpack.c.b16 %v564, %v563
    %v655 = vpack.c.b16 %v566, %v565
    %v656 = vpack.c.b16 %v568, %v567
    %v657 = vpack.c.b16 %v570, %v569
    %v658 = vpack.c.b16 %v572, %v571
    %v659 = vpack.c.b16 %v574, %v573
    %v660 = vpack.c.b16 %v576, %v575
    %v661 = vpack.c.b16 %v578, %v577
    %v662 = vpack.c.b16 %v580, %v579
    %v663 = vpack.c.b16 %v582, %v581
    %v664 = vpack.c.b16 %v584, %v583
    %v665 = vpack.c.b16 %v586, %v585
    %v666 = vpack.c.b16 %v588, %v587
    %v667 = vpack.c.b16 %v590, %v589
    %v668 = vpack.c.b16 %v592, %v591
    %v669 = vpack.c.b16 %v594, %v593
    %v670 = vpack.c.b16 %v596, %v595
    %v671 = vpack.c.b16 %v598, %v597
    %v672 = vpack.c.b16 %v600, %v599
    %v673 = vpack.c.b16 %v602, %v601
    %v674 = vpack.c.b16 %v604, %v603
    %v675 = vpack.c.b16 %v606, %v605
    %v676 = vpack.c.b16 %v608, %v607
    %v677 = vpack.c.b16 %v610, %v609
    %v678 = vpack.c.b16 %v612, %v611
    %v679 = vpack.c.b16 %v614, %v613
    %v680 = vpack.c.b16 %v616, %v615
    %v681 = vpack.c.b16 %v618, %v617
    %v682 = vpack.c.b16 %v620, %v619
    %v683 = vpack.c.b16 %v622, %v621
    %v684 = vpack.c.b16 %v624, %v623
    %v685 = vpack.c.b16 %v626, %v625
    %v686 = vpack.c.b16 %v628, %v627
    %v687 = vpack.c.b16 %v630, %v629
    %v688 = vpack.c.b16 %v632, %v631
    %v689 = vpack.c.b16 %v634, %v633
    %v690 = vpack.c.b16 %v636, %v635
    %v691 = vpack.c.b16 %v638, %v637
    %v692 = vpack.c.b16 %v640, %v639
    %v693 = vpack.c.b16 %v642, %v641
    %v694 = vpack.c.b16 %v644, %v643
    %v695 = vpack.c.b16 %v646, %v645
    %v696 = vpack.c.b16 %v648, %v647
    %745 = vmatprep.subr.bf16.mxu0 0
    %746 = vmatpush1.bf16.msra.mxu0 %v656
    %747 = vmatprep.subr.bf16.mxu0 0
    %748 = vmatpush1.bf16.msra.mxu0 %v655
    %749 = vmatprep.subr.bf16.mxu0 0
    %750 = vmatpush1.bf16.msra.mxu0 %v654
    %751 = vmatprep.subr.bf16.mxu0 0
    %752 = vmatpush1.bf16.msra.mxu0 %v653
    %753 = vmatprep.subr.bf16.mxu0 0
    %754 = vmatpush1.bf16.msra.mxu0 %v652
    %755 = vmatprep.subr.bf16.mxu0 0
    %756 = vmatpush1.bf16.msra.mxu0 %v651
    %757 = vmatprep.subr.bf16.mxu0 0
    %758 = vmatpush1.bf16.msra.mxu0 %v650
    %759 = vmatprep.subr.bf16.mxu0 0
    %760 = vmatpush1.bf16.msra.mxu0 %v649
    %761 = vmatprep.subr.bf16.mxu0 0
    %762 = vmatpush2.bf16.msra.mxu0 %v664
    %763 = vmatprep.subr.bf16.mxu0 0
    %764 = vmatpush2.bf16.msra.mxu0 %v663
    %765 = vmatprep.subr.bf16.mxu0 0
    %766 = vmatpush2.bf16.msra.mxu0 %v662
    %767 = vmatprep.subr.bf16.mxu0 0
    %768 = vmatpush2.bf16.msra.mxu0 %v661
    %769 = vmatprep.subr.bf16.mxu0 0
    %770 = vmatpush2.bf16.msra.mxu0 %v660
    %771 = vmatprep.subr.bf16.mxu0 0
    %772 = vmatpush2.bf16.msra.mxu0 %v659
    %773 = vmatprep.subr.bf16.mxu0 0
    %774 = vmatpush2.bf16.msra.mxu0 %v658
    %775 = vmatprep.subr.bf16.mxu0 0
    %776 = vmatpush2.bf16.msra.mxu0 %v657
    %777 = vmatprep.mubr.bf16.mxu0 %v356
    %778 = vmatmul.mubr.bf16.gmra.mxu0 %v355
    %v779 = vpop.f32.mrf.mxu0
    %v780 = vadd.f32 0.0, %v779
    %v781 = vpop.f32.mrf.mxu0
    %v782 = vpop.f32.mrf.mxu0
    %v783 = vpop.f32.mrf.mxu0
    %784 = vdwg.mxu0
    %785 = vmatprep.subr.bf16.mxu0 0
    %786 = vmatpush1.bf16.msra.mxu0 %v672
    %787 = vmatprep.subr.bf16.mxu0 0
    %788 = vmatpush1.bf16.msra.mxu0 %v671
    %789 = vmatprep.subr.bf16.mxu0 0
    %790 = vmatpush1.bf16.msra.mxu0 %v670
    %791 = vmatprep.subr.bf16.mxu0 0
    %792 = vmatpush1.bf16.msra.mxu0 %v669
    %793 = vmatprep.subr.bf16.mxu0 0
    %794 = vmatpush1.bf16.msra.mxu0 %v668
    %795 = vmatprep.subr.bf16.mxu0 0
    %796 = vmatpush1.bf16.msra.mxu0 %v667
    %797 = vmatprep.subr.bf16.mxu0 0
    %798 = vmatpush1.bf16.msra.mxu0 %v666
    %799 = vmatprep.subr.bf16.mxu0 0
    %800 = vmatpush1.bf16.msra.mxu0 %v665
    %801 = vmatprep.subr.bf16.mxu0 0
    %802 = vmatpush2.bf16.msra.mxu0 %v680
    %803 = vmatprep.subr.bf16.mxu0 0
    %804 = vmatpush2.bf16.msra.mxu0 %v679
    %805 = vmatprep.subr.bf16.mxu0 0
    %806 = vmatpush2.bf16.msra.mxu0 %v678
    %807 = vmatprep.subr.bf16.mxu0 0
    %808 = vmatpush2.bf16.msra.mxu0 %v677
    %809 = vmatprep.subr.bf16.mxu0 0
    %810 = vmatpush2.bf16.msra.mxu0 %v676
    %811 = vmatprep.subr.bf16.mxu0 0
    %812 = vmatpush2.bf16.msra.mxu0 %v675
    %813 = vmatprep.subr.bf16.mxu0 0
    %814 = vmatpush2.bf16.msra.mxu0 %v674
    %815 = vmatprep.subr.bf16.mxu0 0
    %816 = vmatpush2.bf16.msra.mxu0 %v673
    %817 = vmatprep.mubr.bf16.mxu0 %v358
    %818 = vmatmul.mubr.bf16.gmra.mxu0 %v357
    %v819 = vpop.f32.mrf.mxu0
    %v820 = vadd.f32 %v780, %v819
    %v821 = vpop.f32.mrf.mxu0
    %v822 = vpop.f32.mrf.mxu0
    %v823 = vpop.f32.mrf.mxu0
    %824 = vdwg.mxu0
    %825 = vmatprep.subr.bf16.mxu0 0
    %826 = vmatpush1.bf16.msra.mxu0 %v688
    %827 = vmatprep.subr.bf16.mxu0 0
    %828 = vmatpush1.bf16.msra.mxu0 %v687
    %829 = vmatprep.subr.bf16.mxu0 0
    %830 = vmatpush1.bf16.msra.mxu0 %v686
    %831 = vmatprep.subr.bf16.mxu0 0
    %832 = vmatpush1.bf16.msra.mxu0 %v685
    %833 = vmatprep.subr.bf16.mxu0 0
    %834 = vmatpush1.bf16.msra.mxu0 %v684
    %835 = vmatprep.subr.bf16.mxu0 0
    %836 = vmatpush1.bf16.msra.mxu0 %v683
    %837 = vmatprep.subr.bf16.mxu0 0
    %838 = vmatpush1.bf16.msra.mxu0 %v682
    %839 = vmatprep.subr.bf16.mxu0 0
    %840 = vmatpush1.bf16.msra.mxu0 %v681
    %841 = vmatprep.subr.bf16.mxu0 0
    %842 = vmatpush2.bf16.msra.mxu0 %v696
    %843 = vmatprep.subr.bf16.mxu0 0
    %844 = vmatpush2.bf16.msra.mxu0 %v695
    %845 = vmatprep.subr.bf16.mxu0 0
    %846 = vmatpush2.bf16.msra.mxu0 %v694
    %847 = vmatprep.subr.bf16.mxu0 0
    %848 = vmatpush2.bf16.msra.mxu0 %v693
    %849 = vmatprep.subr.bf16.mxu0 0
    %850 = vmatpush2.bf16.msra.mxu0 %v692
    %851 = vmatprep.subr.bf16.mxu0 0
    %852 = vmatpush2.bf16.msra.mxu0 %v691
    %853 = vmatprep.subr.bf16.mxu0 0
    %854 = vmatpush2.bf16.msra.mxu0 %v690
    %855 = vmatprep.subr.bf16.mxu0 0
    %856 = vmatpush2.bf16.msra.mxu0 %v689
    %857 = vmatprep.mubr.bf16.mxu0 %v360
    %858 = vmatmul.mubr.bf16.gmra.mxu0 %v359
    %v859 = vpop.f32.mrf.mxu0
    %v860 = vadd.f32 %v820, %v859
    %v861 = vpop.f32.mrf.mxu0
    %v862 = vpop.f32.mrf.mxu0
    %v863 = vpop.f32.mrf.mxu0
    %864 = vdwg.mxu0
    %v865 = vadd.f32 %v354, %v860
    %vm866 = vcmask 261120
    %867 = vst.msk [vmem:[#allocation2] sm:$0xff] %vm866, %v865
    %v868 = vpack.c.bf16 %v339, %v339
    %v869 = vld [vmem:[%s4] sm:$0xff]
    %v870 = vld [vmem:[%s4 + $0x8] sm:$0xff]
    %v871 = vld [vmem:[%s4 + $0x10] sm:$0xff]
    %v872 = vld [vmem:[%s4 + $0x18] sm:$0xff]
    %v873 = vld [vmem:[%s4 + $0x20] sm:$0xff]
    %v874 = vld [vmem:[%s4 + $0x28] sm:$0xff]
    %v875 = vld [vmem:[%s4 + $0x30] sm:$0xff]
    %v876 = vld [vmem:[%s4 + $0x38] sm:$0xff]
    %v877 = vld [vmem:[%s4 + $0x40] sm:$0xff]
    %v878 = vld [vmem:[%s4 + $0x48] sm:$0xff]
    %v879 = vld [vmem:[%s4 + $0x50] sm:$0xff]
    %v880 = vld [vmem:[%s4 + $0x58] sm:$0xff]
    %v881 = vld [vmem:[%s5] sm:$0x3f]
    %v883 = vlaneseq
    %v884 = vshrl.u32 %v883, 7
    %v885 = vsub.s32 0, %v884
    %v886 = vrot.slane %v881, %v885
    %v887 = vlaneseq
    %v888 = vshrl.u32 %v887, 7
    %v889 = vsub.s32 1, %v888
    %v890 = vrot.slane %v881, %v889
    %v891 = vlaneseq
    %v892 = vshrl.u32 %v891, 7
    %v893 = vsub.s32 2, %v892
    %v894 = vrot.slane %v881, %v893
    %v895 = vlaneseq
    %v896 = vshrl.u32 %v895, 7
    %v897 = vsub.s32 3, %v896
    %v898 = vrot.slane %v881, %v897
    %v899 = vlaneseq
    %v900 = vshrl.u32 %v899, 7
    %v901 = vsub.s32 4, %v900
    %v902 = vrot.slane %v881, %v901
    %v903 = vlaneseq
    %v904 = vshrl.u32 %v903, 7
    %v905 = vsub.s32 5, %v904
    %v906 = vrot.slane %v881, %v905
    %v925 = vunpack.c.l.b16 %v869
    %v926 = vunpack.c.h.b16 %v869
    %v927 = vunpack.c.l.b16 %v870
    %v928 = vunpack.c.h.b16 %v870
    %v929 = vunpack.c.l.b16 %v871
    %v930 = vunpack.c.h.b16 %v871
    %v931 = vunpack.c.l.b16 %v872
    %v932 = vunpack.c.h.b16 %v872
    %v933 = vunpack.c.l.b16 %v873
    %v934 = vunpack.c.h.b16 %v873
    %v935 = vunpack.c.l.b16 %v874
    %v936 = vunpack.c.h.b16 %v874
    %v937 = vunpack.c.l.b16 %v875
    %v938 = vunpack.c.h.b16 %v875
    %v939 = vunpack.c.l.b16 %v876
    %v940 = vunpack.c.h.b16 %v876
    %v941 = vunpack.c.l.b16 %v877
    %v942 = vunpack.c.h.b16 %v877
    %v943 = vunpack.c.l.b16 %v878
    %v944 = vunpack.c.h.b16 %v878
    %v945 = vunpack.c.l.b16 %v879
    %v946 = vunpack.c.h.b16 %v879
    %v947 = vunpack.c.l.b16 %v880
    %v948 = vunpack.c.h.b16 %v880
    %v949 = vpack.c.b16 %v931, %v925
    %v950 = vpack.c.b16 %v932, %v926
    %v951 = vpack.c.b16 %v933, %v927
    %v952 = vpack.c.b16 %v934, %v928
    %v953 = vpack.c.b16 %v935, %v929
    %v954 = vpack.c.b16 %v936, %v930
    %v955 = vpack.c.b16 %v943, %v937
    %v956 = vpack.c.b16 %v944, %v938
    %v957 = vpack.c.b16 %v945, %v939
    %v958 = vpack.c.b16 %v946, %v940
    %v959 = vpack.c.b16 %v947, %v941
    %v960 = vpack.c.b16 %v948, %v942
    %v974 = vsel %vm866, %v868, 0
    %976 = vmatprep.subr.bf16.mxu0 0
    %977 = vmatpush1.bf16.msra.mxu0 0
    %978 = vmatprep.subr.bf16.mxu0 0
    %979 = vmatpush1.bf16.msra.mxu0 0
    %980 = vmatprep.subr.bf16.mxu0 0
    %981 = vmatpush1.bf16.msra.mxu0 0
    %982 = vmatprep.subr.bf16.mxu0 0
    %983 = vmatpush1.bf16.msra.mxu0 0
    %984 = vmatprep.subr.bf16.mxu0 0
    %985 = vmatpush1.bf16.msra.mxu0 0
    %986 = vmatprep.subr.bf16.mxu0 0
    %987 = vmatpush1.bf16.msra.mxu0 0
    %988 = vmatprep.subr.bf16.mxu0 %v956
    %989 = vmatpush1.bf16.msra.mxu0 %v955
    %990 = vmatprep.subr.bf16.mxu0 %v950
    %991 = vmatpush1.bf16.msra.mxu0 %v949
    %992 = vmatprep.subr.bf16.mxu0 0
    %993 = vmatpush2.bf16.msra.mxu0 0
    %994 = vmatprep.subr.bf16.mxu0 0
    %995 = vmatpush2.bf16.msra.mxu0 0
    %996 = vmatprep.subr.bf16.mxu0 0
    %997 = vmatpush2.bf16.msra.mxu0 0
    %998 = vmatprep.subr.bf16.mxu0 0
    %999 = vmatpush2.bf16.msra.mxu0 0
    %1000 = vmatprep.subr.bf16.mxu0 0
    %1001 = vmatpush2.bf16.msra.mxu0 0
    %1002 = vmatprep.subr.bf16.mxu0 0
    %1003 = vmatpush2.bf16.msra.mxu0 0
    %1004 = vmatprep.subr.bf16.mxu0 0
    %1005 = vmatpush2.bf16.msra.mxu0 0
    %1006 = vmatprep.subr.bf16.mxu0 0
    %1007 = vmatpush2.bf16.msra.mxu0 0
    %1008 = vmatprep.mubr.bf16.mxu0 0
    %1009 = vmatmul.mubr.bf16.gmra.mxu0 %v974
    %v1010 = vpop.f32.mrf.mxu0
    %v1011 = vadd.f32 %v886, %v1010
    %v1012 = vpop.f32.mrf.mxu0
    %v1013 = vadd.f32 %v890, %v1012
    %v1014 = vpop.f32.mrf.mxu0
    %v1015 = vpop.f32.mrf.mxu0
    %1016 = vdwg.mxu0
    %1017 = vmatprep.subr.bf16.mxu0 0
    %1018 = vmatpush1.bf16.msra.mxu0 0
    %1019 = vmatprep.subr.bf16.mxu0 0
    %1020 = vmatpush1.bf16.msra.mxu0 0
    %1021 = vmatprep.subr.bf16.mxu0 0
    %1022 = vmatpush1.bf16.msra.mxu0 0
    %1023 = vmatprep.subr.bf16.mxu0 0
    %1024 = vmatpush1.bf16.msra.mxu0 0
    %1025 = vmatprep.subr.bf16.mxu0 0
    %1026 = vmatpush1.bf16.msra.mxu0 0
    %1027 = vmatprep.subr.bf16.mxu0 0
    %1028 = vmatpush1.bf16.msra.mxu0 0
    %1029 = vmatprep.subr.bf16.mxu0 %v958
    %1030 = vmatpush1.bf16.msra.mxu0 %v957
    %1031 = vmatprep.subr.bf16.mxu0 %v952
    %1032 = vmatpush1.bf16.msra.mxu0 %v951
    %1033 = vmatprep.subr.bf16.mxu0 0
    %1034 = vmatpush2.bf16.msra.mxu0 0
    %1035 = vmatprep.subr.bf16.mxu0 0
    %1036 = vmatpush2.bf16.msra.mxu0 0
    %1037 = vmatprep.subr.bf16.mxu0 0
    %1038 = vmatpush2.bf16.msra.mxu0 0
    %1039 = vmatprep.subr.bf16.mxu0 0
    %1040 = vmatpush2.bf16.msra.mxu0 0
    %1041 = vmatprep.subr.bf16.mxu0 0
    %1042 = vmatpush2.bf16.msra.mxu0 0
    %1043 = vmatprep.subr.bf16.mxu0 0
    %1044 = vmatpush2.bf16.msra.mxu0 0
    %1045 = vmatprep.subr.bf16.mxu0 0
    %1046 = vmatpush2.bf16.msra.mxu0 0
    %1047 = vmatprep.subr.bf16.mxu0 0
    %1048 = vmatpush2.bf16.msra.mxu0 0
    %1049 = vmatprep.mubr.bf16.mxu0 0
    %1050 = vmatmul.mubr.bf16.gmra.mxu0 %v974
    %v1051 = vpop.f32.mrf.mxu0
    %v1052 = vadd.f32 %v894, %v1051
    %v1053 = vpop.f32.mrf.mxu0
    %v1054 = vadd.f32 %v898, %v1053
    %v1055 = vpop.f32.mrf.mxu0
    %v1056 = vpop.f32.mrf.mxu0
    %1057 = vdwg.mxu0
    %1058 = vmatprep.subr.bf16.mxu0 0
    %1059 = vmatpush1.bf16.msra.mxu0 0
    %1060 = vmatprep.subr.bf16.mxu0 0
    %1061 = vmatpush1.bf16.msra.mxu0 0
    %1062 = vmatprep.subr.bf16.mxu0 0
    %1063 = vmatpush1.bf16.msra.mxu0 0
    %1064 = vmatprep.subr.bf16.mxu0 0
    %1065 = vmatpush1.bf16.msra.mxu0 0
    %1066 = vmatprep.subr.bf16.mxu0 0
    %1067 = vmatpush1.bf16.msra.mxu0 0
    %1068 = vmatprep.subr.bf16.mxu0 0
    %1069 = vmatpush1.bf16.msra.mxu0 0
    %1070 = vmatprep.subr.bf16.mxu0 %v960
    %1071 = vmatpush1.bf16.msra.mxu0 %v959
    %1072 = vmatprep.subr.bf16.mxu0 %v954
    %1073 = vmatpush1.bf16.msra.mxu0 %v953
    %1074 = vmatprep.subr.bf16.mxu0 0
    %1075 = vmatpush2.bf16.msra.mxu0 0
    %1076 = vmatprep.subr.bf16.mxu0 0
    %1077 = vmatpush2.bf16.msra.mxu0 0
    %1078 = vmatprep.subr.bf16.mxu0 0
    %1079 = vmatpush2.bf16.msra.mxu0 0
    %1080 = vmatprep.subr.bf16.mxu0 0
    %1081 = vmatpush2.bf16.msra.mxu0 0
    %1082 = vmatprep.subr.bf16.mxu0 0
    %1083 = vmatpush2.bf16.msra.mxu0 0
    %1084 = vmatprep.subr.bf16.mxu0 0
    %1085 = vmatpush2.bf16.msra.mxu0 0
    %1086 = vmatprep.subr.bf16.mxu0 0
    %1087 = vmatpush2.bf16.msra.mxu0 0
    %1088 = vmatprep.subr.bf16.mxu0 0
    %1089 = vmatpush2.bf16.msra.mxu0 0
    %1090 = vmatprep.mubr.bf16.mxu0 0
    %1091 = vmatmul.mubr.bf16.gmra.mxu0 %v974
    %v1092 = vpop.f32.mrf.mxu0
    %v1093 = vadd.f32 %v902, %v1092
    %v1094 = vpop.f32.mrf.mxu0
    %v1095 = vadd.f32 %v906, %v1094
    %v1096 = vpop.f32.mrf.mxu0
    %v1097 = vpop.f32.mrf.mxu0
    %1098 = vdwg.mxu0
    %v1099 = vsub.f32 %v348, %v1011
    %v1100 = vsub.f32 %v349, %v1013
    %v1101 = vsub.f32 %v350, %v1052
    %v1102 = vsub.f32 %v351, %v1054
    %v1103 = vsub.f32 %v352, %v1093
    %v1104 = vsub.f32 %v353, %v1095
    %v1105 = vmul.f32 %v1099, %v1099
    %v1106 = vmul.f32 %v1100, %v1100
    %v1107 = vmul.f32 %v1101, %v1101
    %v1108 = vmul.f32 %v1102, %v1102
    %v1109 = vmul.f32 %v1103, %v1103
    %v1110 = vmul.f32 %v1104, %v1104
    %v1111 = vadd.f32 %v1105, 1.837877
    %v1112 = vadd.f32 %v1106, 1.837877
    %v1113 = vadd.f32 %v1107, 1.837877
    %v1114 = vadd.f32 %v1108, 1.837877
    %v1115 = vadd.f32 %v1109, 1.837877
    %v1116 = vadd.f32 %v1110, 1.837877
    %v1117 = vmul.f32 %v1111, -0.5
    %v1118 = vmul.f32 %v1112, -0.5
    %v1119 = vmul.f32 %v1113, -0.5
    %v1120 = vmul.f32 %v1114, -0.5
    %v1121 = vmul.f32 %v1115, -0.5
    %v1122 = vmul.f32 %v1116, -0.5
    %v1123 = vld [vmem:[#allocation3] sm:$0xff]
    %v1124 = vadd.f32 %v1117, %v1118
    %v1125 = vadd.f32 %v1124, %v1119
    %v1126 = vadd.f32 %v1125, %v1120
    %v1127 = vadd.f32 %v1126, %v1121
    %v1128 = vadd.f32 %v1127, %v1122
    %1129 = vadd.xlane.f32.xlu0 %v1128
    %v1130 = vpop.xlane.xlu0 %1129
    %v1131 = vadd.f32 %v1123, %v1130
    %vm1132 = vcmask 7168
    %1133 = vst.msk [vmem:[#allocation3] sm:$0xff] %vm1132, %v1131
    // Predicated region
    $region30: #{tpu_custom_call.1} parent=1 // pred_check
      %p1134 = pneg %p340
    $region31: #{tpu_custom_call.1} parent=1 // pred_check_branch
      %1136 = sbr.rel (%p1134) target = $region33
    $region32: #{tpu_custom_call.1} parent=1 // pred_region
      %v1137 = vld [vmem:[#allocation2] sm:$0xff]
      %v1138 = vld [vmem:[%s2 + $0x98] sm:$0x1]
      %v1139 = vlaneseq
      %v1140 = vshrl.u32 %v1139, 7
      %v1141 = vsub.s32 0, %v1140
      %v1142 = vrot.slane %v1138, %v1141
      %v1143 = vadd.f32 %v1137, %v1142
      %v1144 = vmax.f32 %v1143, 0.0
      %v1145 = vld [vmem:[%s2 + $0x70] sm:$0xff]
      %v1146 = vld [vmem:[%s2 + $0x78] sm:$0xff]
      %v1147 = vld [vmem:[%s2 + $0x80] sm:$0xff]
      %v1148 = vld [vmem:[%s2 + $0x88] sm:$0xff]
      %v1149 = vld [vmem:[%s2 + $0x90] sm:$0x1]
      %v1150 = vlaneseq
      %v1151 = vshrl.u32 %v1150, 7
      %v1152 = vsub.s32 0, %v1151
      %v1153 = vrot.slane %v1149, %v1152
      %v1155 = vsel %vm866, %v1144, 0
      %1157 = vmatprep.subr.mxu0 0.0
      %1158 = vmatpush1.msra.mxu0 0.0
      %1159 = vmatprep.subr.mxu0 0.0
      %1160 = vmatpush1.msra.mxu0 0.0
      %1161 = vmatprep.subr.mxu0 0.0
      %1162 = vmatpush1.msra.mxu0 0.0
      %1163 = vmatprep.subr.mxu0 0.0
      %1164 = vmatpush1.msra.mxu0 0.0
      %1165 = vmatprep.subr.mxu0 0.0
      %1166 = vmatpush1.msra.mxu0 0.0
      %1167 = vmatprep.subr.mxu0 0.0
      %1168 = vmatpush1.msra.mxu0 0.0
      %1169 = vmatprep.subr.mxu0 0.0
      %1170 = vmatpush1.msra.mxu0 0.0
      %1171 = vmatprep.subr.mxu0 0.0
      %1172 = vmatpush1.msra.mxu0 0.0
      %1173 = vmatprep.subr.mxu0 0.0
      %1174 = vmatpush1.msra.mxu0 0.0
      %1175 = vmatprep.subr.mxu0 0.0
      %1176 = vmatpush1.msra.mxu0 0.0
      %1177 = vmatprep.subr.mxu0 0.0
      %1178 = vmatpush1.msra.mxu0 0.0
      %1179 = vmatprep.subr.mxu0 0.0
      %1180 = vmatpush1.msra.mxu0 0.0
      %1181 = vmatprep.subr.mxu0 0.0
      %1182 = vmatpush1.msra.mxu0 %v1148
      %1183 = vmatprep.subr.mxu0 0.0
      %1184 = vmatpush1.msra.mxu0 %v1147
      %1185 = vmatprep.subr.mxu0 0.0
      %1186 = vmatpush1.msra.mxu0 %v1146
      %1187 = vmatprep.subr.mxu0 0.0
      %1188 = vmatpush1.msra.mxu0 %v1145
      %1189 = vmatprep.subr.mxu0 0.0
      %1190 = vmatpush2.msra.mxu0 0.0
      %1191 = vmatprep.subr.mxu0 0.0
      %1192 = vmatpush2.msra.mxu0 0.0
      %1193 = vmatprep.subr.mxu0 0.0
      %1194 = vmatpush2.msra.mxu0 0.0
      %1195 = vmatprep.subr.mxu0 0.0
      %1196 = vmatpush2.msra.mxu0 0.0
      %1197 = vmatprep.subr.mxu0 0.0
      %1198 = vmatpush2.msra.mxu0 0.0
      %1199 = vmatprep.subr.mxu0 0.0
      %1200 = vmatpush2.msra.mxu0 0.0
      %1201 = vmatprep.subr.mxu0 0.0
      %1202 = vmatpush2.msra.mxu0 0.0
      %1203 = vmatprep.subr.mxu0 0.0
      %1204 = vmatpush2.msra.mxu0 0.0
      %1205 = vmatprep.subr.mxu0 0.0
      %1206 = vmatpush2.msra.mxu0 0.0
      %1207 = vmatprep.subr.mxu0 0.0
      %1208 = vmatpush2.msra.mxu0 0.0
      %1209 = vmatprep.subr.mxu0 0.0
      %1210 = vmatpush2.msra.mxu0 0.0
      %1211 = vmatprep.subr.mxu0 0.0
      %1212 = vmatpush2.msra.mxu0 0.0
      %1213 = vmatprep.subr.mxu0 0.0
      %1214 = vmatpush2.msra.mxu0 0.0
      %1215 = vmatprep.subr.mxu0 0.0
      %1216 = vmatpush2.msra.mxu0 0.0
      %1217 = vmatprep.subr.mxu0 0.0
      %1218 = vmatpush2.msra.mxu0 0.0
      %1219 = vmatprep.subr.mxu0 0.0
      %1220 = vmatpush2.msra.mxu0 0.0
      %1221 = vmatprep.mubr.f32.mxu0 0.0
      %1222 = vmatmul.mubr.f32.gmra.mxu0 %v1155
      %v1223 = vpop.f32.mrf.mxu0
      %v1224 = vadd.f32 %v1153, %v1223
      %v1225 = vpop.f32.mrf.mxu0
      %1226 = vdwg.mxu0
      %v1227 = vmul.f32 %v1224, 1.442695
      %v1228 = vpow.pop %v1227
      %v1229 = vmul.f32 %v241, %v244
      %v1230 = vadd.f32 %v25, %v1229
      %v1231 = vsub.f32 -2.3025851, %v1224
      %v1232 = vmul.f32 %v1228, %v1228
      %v1233 = vsub.f32 %v1224, %v1230
      %v1234 = vmul.f32 %v1233, %v1233
      %1236 = vrot.lane.b32.xlu0 %v1234, 4
      %v1237 = vpop.permute.xlu0 %1236
      %v1239 = vadd.f32 %v1232, %v1237
      %v1240 = vrcp.pop 0.02
      %v1241 = vmul.f32 %v1239, %v1240
      %v1242 = vadd.f32 %v1231, %v1241
      %v1243 = vsub.f32 %v1242, 0.5
      %1245 = vrot.lane.b32.xlu0 %v1243, 124
      %v1246 = vpop.permute.xlu0 %1245
      %v1248 = vsel %vm263, %v1246, 0.0
      %1249 = vadd.xlane.f32.xlu0 %v1248
      %v1250 = vpop.xlane.xlu0 %1249
      %1251 = vrot.lane.b32.xlu0 %v25, 115
      %v1252 = vpop.permute.xlu0 %1251
      %v1254 = vmul.f32 %v1228, %v1252
      %1256 = vrot.lane.b32.xlu0 %v1254, 124
      %v1257 = vpop.permute.xlu0 %1256
      %v1259 = vadd.f32 %v1224, %v1257
      %v1260 = vld [vmem:[#allocation3] sm:$0xff]
      %1262 = vrot.lane.b32.xlu0 %v244, 4
      %v1263 = vpop.permute.xlu0 %1262
      %1266 = vrot.lane.b32.xlu0 %v1260, 8
      %v1267 = vpop.permute.xlu0 %1266
      %v1269 = vsel %vm263, %v1259, %v1263
      %v1270 = vsel %vm42, %v1269, %v1267
      %vm1271 = vcmask 72704
      %v1272 = vsel %vm1271, %v1270, %v1250
      %vm1273 = vcmask 80896
      %v1274 = vsel %vm1273, %v1272, 0.0
      %1275 = vst [vmem:[#allocation4] sm:$0xff] %v1274
    $region33: #{tpu_custom_call.1} parent=1 // pred_fallthru
      _
    // Predicated region
    $region34: #{tpu_custom_call.1} parent=1 // pred_check
      _
    $region35: #{tpu_custom_call.1} parent=1 // pred_check_branch
      %1277 = sbr.rel (0) target = $region37
    $region36: #{tpu_custom_call.1} parent=1 // pred_region
      %s1279 = ssub.s32 128, 128
      %1280 = vsyncadd [#allocation5], %s1279
      %s1282 = sshll.u32 [#allocation4], 4
      %s1283 = int_to_ptr.vmem [resolvable:$true] %s1282
      %1285 = dma.vmem_to_hbm [thread:$0]  %s1283, 128, %s6, [#allocation5]
    $region37: #{tpu_custom_call.1} parent=1 // pred_fallthru
      _
    // Predicated region
    $region38: #{tpu_custom_call.1} parent=1 // pred_check
      _
    $region39: #{tpu_custom_call.1} parent=1 // pred_check_branch
      %1287 = sbr.rel (0) target = $region41
    $region40: #{tpu_custom_call.1} parent=1 // pred_region
      %1288 = dma.done [#allocation5], 128
    $region41: #{tpu_custom_call.1} parent=1 // pred_fallthru
      _
    %1289 = vsyncpa [#allocation5], 1

</llo_original>
